<compile_context>
chip_gen: v5e
topology: v5e:2x2
jax: 0.10.0
libtpu: 0.0.40
codegen_flags: <defaults>
</compile_context>

<pallas_src>
import jax
import jax.numpy as jnp
from jax.experimental import pallas as pl
from jax.experimental.pallas import tpu as pltpu

LANE = 128


def _round_up(n, m):
    return ((n + m - 1) // m) * m


def _pad_axis(x, axis, target):
    if x.shape[axis] == target:
        return x
    pads = [(0, 0)] * x.ndim
    pads[axis] = (0, target - x.shape[axis])
    return jnp.pad(x, pads)


# ---------------------------------------------------------------------------
# Fused kernel: conv3x3(same) + bias + ReLU + GAP + linear head, one batch
# element per grid step.
# ---------------------------------------------------------------------------
def fused_backbone_branch_kernel(x_ref, w_ref, cb_ref, fcw_ref, fcb_ref, out_ref):
    """
    x_ref  : (H+2, W+2, C)  halo-padded NHWC image tile (f32, VMEM)
    w_ref  : (9, C, Dp)     conv weight, tap-major (bf16, VMEM)
    cb_ref : (1, Dp)        conv bias (f32, VMEM)
    fcw_ref: (Dp, Lp)       branch weight (bf16, VMEM)
    fcb_ref: (1, Lp)        branch bias (f32, VMEM)
    out_ref: (1, Lp)        logits for this batch element (f32, VMEM)
    """
    Hp, Wp, C = x_ref.shape
    H, W = Hp - 2, Wp - 2
    Dp = w_ref.shape[-1]

    # Direct 3x3 conv as 9 accumulated (H*W, C) @ (C, Dp) matmuls — taps are
    # built in VMEM from the halo-padded tile (no im2col in HBM).
    acc = jnp.zeros((H * W, Dp), jnp.float32)
    t = 0
    for dy in range(3):
        for dx in range(3):
            tap = x_ref[dy:dy + H, dx:dx + W, :].reshape(H * W, C)
            acc = acc + jnp.dot(tap.astype(jnp.bfloat16), w_ref[t],
                                preferred_element_type=jnp.float32)
            t += 1

    feat = jnp.maximum(acc + cb_ref[...], 0.0)          # bias + ReLU (f32, VPU)
    pooled = jnp.mean(feat, axis=0, keepdims=True)      # GAP -> cls_token (1, Dp)

    # Branch head fused in: logits = cls_token @ fc_w + fc_b
    logits = jnp.dot(pooled.astype(jnp.bfloat16), fcw_ref[...],
                     preferred_element_type=jnp.float32) + fcb_ref[...]
    out_ref[...] = logits                               # single dense lane-padded store


# ---------------------------------------------------------------------------
# Wrapper (plain JAX glue): layout conversion, halo pad, parameter padding.
# ---------------------------------------------------------------------------
def backbone_one_branch_forward(x_nchw, conv_w, conv_b, fc_w, fc_b):
    """Forward pass of CBackboneOneBranch. Returns a list with one logits array."""
    B, C, H, W = x_nchw.shape
    D = conv_w.shape[-1]
    L = fc_w.shape[-1]
    Dp = _round_up(D, LANE)        # lane-dense feature width
    Lp = _round_up(L, LANE)        # lane-dense logits width

    # NCHW -> NHWC with a 1-pixel halo for the 3x3 'same' conv (only pad, no im2col).
    x_nhwc = jnp.transpose(x_nchw, (0, 2, 3, 1)).astype(jnp.float32)
    x_pad = jnp.pad(x_nhwc, ((0, 0), (1, 1), (1, 1), (0, 0)))        # (B, H+2, W+2, C)

    # Parameters: zero-pad to lane multiples, MXU operands pre-cast to bf16 once.
    conv_w_p = _pad_axis(conv_w.reshape(9, C, D), 2, Dp).astype(jnp.bfloat16)  # (9, C, Dp)
    conv_b_p = _pad_axis(conv_b.reshape(1, D), 1, Dp).astype(jnp.float32)      # (1, Dp)
    fc_w_p = _pad_axis(_pad_axis(fc_w, 0, Dp), 1, Lp).astype(jnp.bfloat16)     # (Dp, Lp)
    fc_b_p = _pad_axis(fc_b.reshape(1, L), 1, Lp).astype(jnp.float32)          # (1, Lp)

    logits_padded = pl.pallas_call(
        fused_backbone_branch_kernel,
        out_shape=jax.ShapeDtypeStruct((B, 1, Lp), jnp.float32),
        grid=(B,),
        in_specs=[
            pl.BlockSpec((None, H + 2, W + 2, C), lambda b: (b, 0, 0, 0)),
            pl.BlockSpec((9, C, Dp), lambda b: (0, 0, 0)),
            pl.BlockSpec((1, Dp), lambda b: (0, 0)),
            pl.BlockSpec((Dp, Lp), lambda b: (0, 0)),
            pl.BlockSpec((1, Lp), lambda b: (0, 0)),
        ],
        out_specs=pl.BlockSpec((None, 1, Lp), lambda b: (b, 0, 0)),
        compiler_params=pltpu.CompilerParams(
            dimension_semantics=("parallel",)),
    )(x_pad, conv_w_p, conv_b_p, fc_w_p, fc_b_p)

    logits = logits_padded.reshape(B, Lp)[:, :L]
    branch_outputs = [logits]   # mirrors `branch_outputs.append(logits)` in PyTorch
    return branch_outputs


def _reference_forward(x_nchw, conv_w, conv_b, fc_w, fc_b):
    """Pure-JAX f32 reference for correctness checking."""
    x_nhwc = jnp.transpose(x_nchw, (0, 2, 3, 1)).astype(jnp.float32)
    y = jax.lax.conv_general_dilated(
        x_nhwc, conv_w, window_strides=(1, 1), padding="SAME",
        dimension_numbers=("NHWC", "HWIO", "NHWC"))
    y = jnp.maximum(y + conv_b, 0.0)
    cls_token = jnp.mean(y, axis=(1, 2))
    return cls_token @ fc_w + fc_b


# ---------------------------------------------------------------------------
# Main
# ---------------------------------------------------------------------------
if __name__ == "__main__":
    key = jax.random.PRNGKey(0)
    kx, kw1, kb1, kw2, kb2 = jax.random.split(key, 5)

    B, C, H, W = 2, 4, 16, 16    # small NCHW input, PyTorch convention
    D = 32                       # backbone.out_feat_dim
    num_leaves = 10              # len(hier_info.hierarchy_int)

    x_nchw = jax.random.normal(kx, (B, C, H, W), jnp.float32)
    conv_w = 0.1 * jax.random.normal(kw1, (3, 3, C, D), jnp.float32)   # HWIO
    conv_b = 0.1 * jax.random.normal(kb1, (D,), jnp.float32)
    fc_w = 0.1 * jax.random.normal(kw2, (D, num_leaves), jnp.float32)  # (in, out)
    fc_b = 0.1 * jax.random.normal(kb2, (num_leaves,), jnp.float32)

    branch_outputs = backbone_one_branch_forward(x_nchw, conv_w, conv_b, fc_w, fc_b)
    logits = jax.block_until_ready(branch_outputs[0])

    assert isinstance(branch_outputs, list) and len(branch_outputs) == 1
    assert logits.shape == (B, num_leaves)

    ref = _reference_forward(x_nchw, conv_w, conv_b, fc_w, fc_b)
    # bf16 MXU inputs with f32 accumulation -> looser tolerance vs the f32 reference.
    assert jnp.allclose(logits, ref, atol=2e-2, rtol=2e-2), "mismatch vs JAX reference"

    print("KERNEL_OK")
</pallas_src>

<mosaic_0001>
module attributes {stable_mosaic.version = 11 : i64} {
  func.func @fused_backbone_branch_kernel(%arg0: i32, %arg1: memref<1x18x18x4xf32, #tpu.memory_space<vmem>>, %arg2: memref<9x4x128xbf16, #tpu.memory_space<vmem>>, %arg3: memref<1x128xf32, #tpu.memory_space<vmem>>, %arg4: memref<128x128xbf16, #tpu.memory_space<vmem>>, %arg5: memref<1x128xf32, #tpu.memory_space<vmem>>, %arg6: memref<1x1x128xf32, #tpu.memory_space<vmem>>) attributes {dimension_semantics = [#tpu.dimension_semantics<parallel>], iteration_bounds = array<i64: 2>, scalar_prefetch = 0 : i64, scratch_operands = 0 : i64, tpu.core_type = #tpu.core_type<tc>, window_params = [{transform_indices = @transform_0, window_bounds = array<i64: 1, 18, 18, 4>}, {pipeline_mode = #tpu.pipeline_mode<synchronous>, transform_indices = @transform_1, window_bounds = array<i64: 9, 4, 128>}, {pipeline_mode = #tpu.pipeline_mode<synchronous>, transform_indices = @transform_2, window_bounds = array<i64: 1, 128>}, {pipeline_mode = #tpu.pipeline_mode<synchronous>, transform_indices = @transform_3, window_bounds = array<i64: 128, 128>}, {pipeline_mode = #tpu.pipeline_mode<synchronous>, transform_indices = @transform_4, window_bounds = array<i64: 1, 128>}, {transform_indices = @transform_5, window_bounds = array<i64: 1, 1, 128>}]} {
    %cst = arith.constant 0.000000e+00 : f32
    %0 = vector.broadcast %cst : f32 to vector<256x128xf32>
    %c0 = arith.constant 0 : index
    %c0_0 = arith.constant 0 : index
    %c0_1 = arith.constant 0 : index
    %c0_2 = arith.constant 0 : index
    %1 = vector.load %arg1[%c0, %c0_0, %c0_1, %c0_2] : memref<1x18x18x4xf32, #tpu.memory_space<vmem>>, vector<1x16x16x4xf32>
    %2 = vector.shape_cast %1 : vector<1x16x16x4xf32> to vector<16x16x4xf32>
    %3 = vector.shape_cast %2 : vector<16x16x4xf32> to vector<256x4xf32>
    %4 = arith.truncf %3 : vector<256x4xf32> to vector<256x4xbf16>
    %c0_3 = arith.constant 0 : index
    %c0_4 = arith.constant 0 : index
    %c0_5 = arith.constant 0 : index
    %5 = vector.load %arg2[%c0_3, %c0_4, %c0_5] : memref<9x4x128xbf16, #tpu.memory_space<vmem>>, vector<1x4x128xbf16>
    %6 = vector.shape_cast %5 : vector<1x4x128xbf16> to vector<4x128xbf16>
    %cst_6 = arith.constant dense<0.000000e+00> : vector<256x128xf32>
    %7 = tpu.matmul %4, %6, %cst_6 {dimension_numbers = #tpu.dot_dimension_numbers<[1], [0], [0], [1], [0, 0, 1, 1], [], []>} : vector<256x4xbf16>, vector<4x128xbf16>, vector<256x128xf32> -> vector<256x128xf32>
    %8 = arith.addf %0, %7 : vector<256x128xf32>
    %c0_7 = arith.constant 0 : index
    %c0_8 = arith.constant 0 : index
    %c1 = arith.constant 1 : index
    %c0_9 = arith.constant 0 : index
    %9 = vector.load %arg1[%c0_7, %c0_8, %c1, %c0_9] : memref<1x18x18x4xf32, #tpu.memory_space<vmem>>, vector<1x16x16x4xf32>
    %10 = vector.shape_cast %9 : vector<1x16x16x4xf32> to vector<16x16x4xf32>
    %11 = vector.shape_cast %10 : vector<16x16x4xf32> to vector<256x4xf32>
    %12 = arith.truncf %11 : vector<256x4xf32> to vector<256x4xbf16>
    %c1_10 = arith.constant 1 : index
    %c0_11 = arith.constant 0 : index
    %c0_12 = arith.constant 0 : index
    %13 = vector.load %arg2[%c1_10, %c0_11, %c0_12] : memref<9x4x128xbf16, #tpu.memory_space<vmem>>, vector<1x4x128xbf16>
    %14 = vector.shape_cast %13 : vector<1x4x128xbf16> to vector<4x128xbf16>
    %cst_13 = arith.constant dense<0.000000e+00> : vector<256x128xf32>
    %15 = tpu.matmul %12, %14, %cst_13 {dimension_numbers = #tpu.dot_dimension_numbers<[1], [0], [0], [1], [0, 0, 1, 1], [], []>} : vector<256x4xbf16>, vector<4x128xbf16>, vector<256x128xf32> -> vector<256x128xf32>
    %16 = arith.addf %8, %15 : vector<256x128xf32>
    %c0_14 = arith.constant 0 : index
    %c0_15 = arith.constant 0 : index
    %c2 = arith.constant 2 : index
    %c0_16 = arith.constant 0 : index
    %17 = vector.load %arg1[%c0_14, %c0_15, %c2, %c0_16] : memref<1x18x18x4xf32, #tpu.memory_space<vmem>>, vector<1x16x16x4xf32>
    %18 = vector.shape_cast %17 : vector<1x16x16x4xf32> to vector<16x16x4xf32>
    %19 = vector.shape_cast %18 : vector<16x16x4xf32> to vector<256x4xf32>
    %20 = arith.truncf %19 : vector<256x4xf32> to vector<256x4xbf16>
    %c2_17 = arith.constant 2 : index
    %c0_18 = arith.constant 0 : index
    %c0_19 = arith.constant 0 : index
    %21 = vector.load %arg2[%c2_17, %c0_18, %c0_19] : memref<9x4x128xbf16, #tpu.memory_space<vmem>>, vector<1x4x128xbf16>
    %22 = vector.shape_cast %21 : vector<1x4x128xbf16> to vector<4x128xbf16>
    %cst_20 = arith.constant dense<0.000000e+00> : vector<256x128xf32>
    %23 = tpu.matmul %20, %22, %cst_20 {dimension_numbers = #tpu.dot_dimension_numbers<[1], [0], [0], [1], [0, 0, 1, 1], [], []>} : vector<256x4xbf16>, vector<4x128xbf16>, vector<256x128xf32> -> vector<256x128xf32>
    %24 = arith.addf %16, %23 : vector<256x128xf32>
    %c0_21 = arith.constant 0 : index
    %c1_22 = arith.constant 1 : index
    %c0_23 = arith.constant 0 : index
    %c0_24 = arith.constant 0 : index
    %25 = vector.load %arg1[%c0_21, %c1_22, %c0_23, %c0_24] : memref<1x18x18x4xf32, #tpu.memory_space<vmem>>, vector<1x16x16x4xf32>
    %26 = vector.shape_cast %25 : vector<1x16x16x4xf32> to vector<16x16x4xf32>
    %27 = vector.shape_cast %26 : vector<16x16x4xf32> to vector<256x4xf32>
    %28 = arith.truncf %27 : vector<256x4xf32> to vector<256x4xbf16>
    %c3 = arith.constant 3 : index
    %c0_25 = arith.constant 0 : index
    %c0_26 = arith.constant 0 : index
    %29 = vector.load %arg2[%c3, %c0_25, %c0_26] : memref<9x4x128xbf16, #tpu.memory_space<vmem>>, vector<1x4x128xbf16>
    %30 = vector.shape_cast %29 : vector<1x4x128xbf16> to vector<4x128xbf16>
    %cst_27 = arith.constant dense<0.000000e+00> : vector<256x128xf32>
    %31 = tpu.matmul %28, %30, %cst_27 {dimension_numbers = #tpu.dot_dimension_numbers<[1], [0], [0], [1], [0, 0, 1, 1], [], []>} : vector<256x4xbf16>, vector<4x128xbf16>, vector<256x128xf32> -> vector<256x128xf32>
    %32 = arith.addf %24, %31 : vector<256x128xf32>
    %c0_28 = arith.constant 0 : index
    %c1_29 = arith.constant 1 : index
    %c1_30 = arith.constant 1 : index
    %c0_31 = arith.constant 0 : index
    %33 = vector.load %arg1[%c0_28, %c1_29, %c1_30, %c0_31] : memref<1x18x18x4xf32, #tpu.memory_space<vmem>>, vector<1x16x16x4xf32>
    %34 = vector.shape_cast %33 : vector<1x16x16x4xf32> to vector<16x16x4xf32>
    %35 = vector.shape_cast %34 : vector<16x16x4xf32> to vector<256x4xf32>
    %36 = arith.truncf %35 : vector<256x4xf32> to vector<256x4xbf16>
    %c4 = arith.constant 4 : index
    %c0_32 = arith.constant 0 : index
    %c0_33 = arith.constant 0 : index
    %37 = vector.load %arg2[%c4, %c0_32, %c0_33] : memref<9x4x128xbf16, #tpu.memory_space<vmem>>, vector<1x4x128xbf16>
    %38 = vector.shape_cast %37 : vector<1x4x128xbf16> to vector<4x128xbf16>
    %cst_34 = arith.constant dense<0.000000e+00> : vector<256x128xf32>
    %39 = tpu.matmul %36, %38, %cst_34 {dimension_numbers = #tpu.dot_dimension_numbers<[1], [0], [0], [1], [0, 0, 1, 1], [], []>} : vector<256x4xbf16>, vector<4x128xbf16>, vector<256x128xf32> -> vector<256x128xf32>
    %40 = arith.addf %32, %39 : vector<256x128xf32>
    %c0_35 = arith.constant 0 : index
    %c1_36 = arith.constant 1 : index
    %c2_37 = arith.constant 2 : index
    %c0_38 = arith.constant 0 : index
    %41 = vector.load %arg1[%c0_35, %c1_36, %c2_37, %c0_38] : memref<1x18x18x4xf32, #tpu.memory_space<vmem>>, vector<1x16x16x4xf32>
    %42 = vector.shape_cast %41 : vector<1x16x16x4xf32> to vector<16x16x4xf32>
    %43 = vector.shape_cast %42 : vector<16x16x4xf32> to vector<256x4xf32>
    %44 = arith.truncf %43 : vector<256x4xf32> to vector<256x4xbf16>
    %c5 = arith.constant 5 : index
    %c0_39 = arith.constant 0 : index
    %c0_40 = arith.constant 0 : index
    %45 = vector.load %arg2[%c5, %c0_39, %c0_40] : memref<9x4x128xbf16, #tpu.memory_space<vmem>>, vector<1x4x128xbf16>
    %46 = vector.shape_cast %45 : vector<1x4x128xbf16> to vector<4x128xbf16>
    %cst_41 = arith.constant dense<0.000000e+00> : vector<256x128xf32>
    %47 = tpu.matmul %44, %46, %cst_41 {dimension_numbers = #tpu.dot_dimension_numbers<[1], [0], [0], [1], [0, 0, 1, 1], [], []>} : vector<256x4xbf16>, vector<4x128xbf16>, vector<256x128xf32> -> vector<256x128xf32>
    %48 = arith.addf %40, %47 : vector<256x128xf32>
    %c0_42 = arith.constant 0 : index
    %c2_43 = arith.constant 2 : index
    %c0_44 = arith.constant 0 : index
    %c0_45 = arith.constant 0 : index
    %49 = vector.load %arg1[%c0_42, %c2_43, %c0_44, %c0_45] : memref<1x18x18x4xf32, #tpu.memory_space<vmem>>, vector<1x16x16x4xf32>
    %50 = vector.shape_cast %49 : vector<1x16x16x4xf32> to vector<16x16x4xf32>
    %51 = vector.shape_cast %50 : vector<16x16x4xf32> to vector<256x4xf32>
    %52 = arith.truncf %51 : vector<256x4xf32> to vector<256x4xbf16>
    %c6 = arith.constant 6 : index
    %c0_46 = arith.constant 0 : index
    %c0_47 = arith.constant 0 : index
    %53 = vector.load %arg2[%c6, %c0_46, %c0_47] : memref<9x4x128xbf16, #tpu.memory_space<vmem>>, vector<1x4x128xbf16>
    %54 = vector.shape_cast %53 : vector<1x4x128xbf16> to vector<4x128xbf16>
    %cst_48 = arith.constant dense<0.000000e+00> : vector<256x128xf32>
    %55 = tpu.matmul %52, %54, %cst_48 {dimension_numbers = #tpu.dot_dimension_numbers<[1], [0], [0], [1], [0, 0, 1, 1], [], []>} : vector<256x4xbf16>, vector<4x128xbf16>, vector<256x128xf32> -> vector<256x128xf32>
    %56 = arith.addf %48, %55 : vector<256x128xf32>
    %c0_49 = arith.constant 0 : index
    %c2_50 = arith.constant 2 : index
    %c1_51 = arith.constant 1 : index
    %c0_52 = arith.constant 0 : index
    %57 = vector.load %arg1[%c0_49, %c2_50, %c1_51, %c0_52] : memref<1x18x18x4xf32, #tpu.memory_space<vmem>>, vector<1x16x16x4xf32>
    %58 = vector.shape_cast %57 : vector<1x16x16x4xf32> to vector<16x16x4xf32>
    %59 = vector.shape_cast %58 : vector<16x16x4xf32> to vector<256x4xf32>
    %60 = arith.truncf %59 : vector<256x4xf32> to vector<256x4xbf16>
    %c7 = arith.constant 7 : index
    %c0_53 = arith.constant 0 : index
    %c0_54 = arith.constant 0 : index
    %61 = vector.load %arg2[%c7, %c0_53, %c0_54] : memref<9x4x128xbf16, #tpu.memory_space<vmem>>, vector<1x4x128xbf16>
    %62 = vector.shape_cast %61 : vector<1x4x128xbf16> to vector<4x128xbf16>
    %cst_55 = arith.constant dense<0.000000e+00> : vector<256x128xf32>
    %63 = tpu.matmul %60, %62, %cst_55 {dimension_numbers = #tpu.dot_dimension_numbers<[1], [0], [0], [1], [0, 0, 1, 1], [], []>} : vector<256x4xbf16>, vector<4x128xbf16>, vector<256x128xf32> -> vector<256x128xf32>
    %64 = arith.addf %56, %63 : vector<256x128xf32>
    %c0_56 = arith.constant 0 : index
    %c2_57 = arith.constant 2 : index
    %c2_58 = arith.constant 2 : index
    %c0_59 = arith.constant 0 : index
    %65 = vector.load %arg1[%c0_56, %c2_57, %c2_58, %c0_59] : memref<1x18x18x4xf32, #tpu.memory_space<vmem>>, vector<1x16x16x4xf32>
    %66 = vector.shape_cast %65 : vector<1x16x16x4xf32> to vector<16x16x4xf32>
    %67 = vector.shape_cast %66 : vector<16x16x4xf32> to vector<256x4xf32>
    %68 = arith.truncf %67 : vector<256x4xf32> to vector<256x4xbf16>
    %c8 = arith.constant 8 : index
    %c0_60 = arith.constant 0 : index
    %c0_61 = arith.constant 0 : index
    %69 = vector.load %arg2[%c8, %c0_60, %c0_61] : memref<9x4x128xbf16, #tpu.memory_space<vmem>>, vector<1x4x128xbf16>
    %70 = vector.shape_cast %69 : vector<1x4x128xbf16> to vector<4x128xbf16>
    %cst_62 = arith.constant dense<0.000000e+00> : vector<256x128xf32>
    %71 = tpu.matmul %68, %70, %cst_62 {dimension_numbers = #tpu.dot_dimension_numbers<[1], [0], [0], [1], [0, 0, 1, 1], [], []>} : vector<256x4xbf16>, vector<4x128xbf16>, vector<256x128xf32> -> vector<256x128xf32>
    %72 = arith.addf %64, %71 : vector<256x128xf32>
    %c0_63 = arith.constant 0 : index
    %c0_64 = arith.constant 0 : index
    %73 = vector.load %arg3[%c0_63, %c0_64] : memref<1x128xf32, #tpu.memory_space<vmem>>, vector<1x128xf32>
    %74 = vector.broadcast %73 : vector<1x128xf32> to vector<256x128xf32>
    %75 = arith.addf %72, %74 : vector<256x128xf32>
    %cst_65 = arith.constant 0.000000e+00 : f32
    %76 = vector.broadcast %cst_65 : f32 to vector<256x128xf32>
    %77 = arith.maximumf %75, %76 : vector<256x128xf32>
    %cst_66 = arith.constant dense<0.000000e+00> : vector<128xf32>
    %78 = vector.multi_reduction <add>, %77, %cst_66 [0] : vector<256x128xf32> to vector<128xf32>
    %79 = vector.shape_cast %78 : vector<128xf32> to vector<1x128xf32>
    %cst_67 = arith.constant 2.560000e+02 : f32
    %80 = vector.broadcast %cst_67 : f32 to vector<1x128xf32>
    %81 = arith.divf %79, %80 : vector<1x128xf32>
    %82 = arith.truncf %81 : vector<1x128xf32> to vector<1x128xbf16>
    %c0_68 = arith.constant 0 : index
    %c0_69 = arith.constant 0 : index
    %83 = vector.load %arg4[%c0_68, %c0_69] : memref<128x128xbf16, #tpu.memory_space<vmem>>, vector<128x128xbf16>
    %cst_70 = arith.constant dense<0.000000e+00> : vector<1x128xf32>
    %84 = tpu.matmul %82, %83, %cst_70 {dimension_numbers = #tpu.dot_dimension_numbers<[1], [0], [0], [1], [0, 0, 1, 1], [], []>} : vector<1x128xbf16>, vector<128x128xbf16>, vector<1x128xf32> -> vector<1x128xf32>
    %c0_71 = arith.constant 0 : index
    %c0_72 = arith.constant 0 : index
    %85 = vector.load %arg5[%c0_71, %c0_72] : memref<1x128xf32, #tpu.memory_space<vmem>>, vector<1x128xf32>
    %86 = arith.addf %84, %85 : vector<1x128xf32>
    %c0_73 = arith.constant 0 : index
    %c0_74 = arith.constant 0 : index
    %c0_75 = arith.constant 0 : index
    %87 = vector.load %arg6[%c0_73, %c0_74, %c0_75] : memref<1x1x128xf32, #tpu.memory_space<vmem>>, vector<1x1x128xf32>
    %88 = vector.shape_cast %87 : vector<1x1x128xf32> to vector<1x128xf32>
    %89 = vector.shape_cast %86 : vector<1x128xf32> to vector<1x1x128xf32>
    tpu.vector_store %arg6[%c0_73, %c0_74, %c0_75], %89 {strides = array<i32>} : memref<1x1x128xf32, #tpu.memory_space<vmem>>, vector<1x1x128xf32>,
    return
  }
  func.func @transform_0(%arg0: i32) -> (i32, i32, i32, i32) {
    %c0_i32 = arith.constant 0 : i32
    %c0_i32_0 = arith.constant 0 : i32
    %c0_i32_1 = arith.constant 0 : i32
    %c0_i32_2 = arith.constant 0 : i32
    return %arg0, %c0_i32, %c0_i32_0, %c0_i32_1 : i32, i32, i32, i32
  }
  func.func @transform_1(%arg0: i32) -> (i32, i32, i32) {
    %c0_i32 = arith.constant 0 : i32
    %c0_i32_0 = arith.constant 0 : i32
    %c0_i32_1 = arith.constant 0 : i32
    %c0_i32_2 = arith.constant 0 : i32
    return %c0_i32, %c0_i32_0, %c0_i32_1 : i32, i32, i32
  }
  func.func @transform_2(%arg0: i32) -> (i32, i32) {
    %c0_i32 = arith.constant 0 : i32
    %c0_i32_0 = arith.constant 0 : i32
    %c0_i32_1 = arith.constant 0 : i32
    return %c0_i32, %c0_i32_0 : i32, i32
  }
  func.func @transform_3(%arg0: i32) -> (i32, i32) {
    %c0_i32 = arith.constant 0 : i32
    %c0_i32_0 = arith.constant 0 : i32
    %c0_i32_1 = arith.constant 0 : i32
    return %c0_i32, %c0_i32_0 : i32, i32
  }
  func.func @transform_4(%arg0: i32) -> (i32, i32) {
    %c0_i32 = arith.constant 0 : i32
    %c0_i32_0 = arith.constant 0 : i32
    %c0_i32_1 = arith.constant 0 : i32
    return %c0_i32, %c0_i32_0 : i32, i32
  }
  func.func @transform_5(%arg0: i32) -> (i32, i32, i32) {
    %c0_i32 = arith.constant 0 : i32
    %c0_i32_0 = arith.constant 0 : i32
    %c0_i32_1 = arith.constant 0 : i32
    return %arg0, %c0_i32, %c0_i32_0 : i32, i32, i32
  }
}

</mosaic_0001>

<llo_original>
// kernel: tpu_custom_call.1
$region0: #{tpu_custom_call.1}
  #allocation0 [shape = 'u32[]', space=smem, size = 0x4, offset = 0x4, fixed_abs, tag = 'smem constant byte address 0x4 - core index']
  #allocation1 [shape = 'u32[72,128]{1,0:T(1,128)}', space=vmem, size = 0x9000, scoped, tag = 'internal scratch']
  %s0 = inlined_call_operand.vmem [shape: f32[2,18,18,4], index: 0, kind: input, shape index: {}]
  %s1 = inlined_call_operand.vmem [shape: bf16[9,4,128], index: 1, kind: input, shape index: {}]
  %s2 = inlined_call_operand.vmem [shape: f32[1,128], index: 2, kind: input, shape index: {}]
  %s3 = inlined_call_operand.vmem [shape: bf16[128,128], index: 3, kind: input, shape index: {}]
  %s4 = inlined_call_operand.vmem [shape: f32[1,128], index: 4, kind: input, shape index: {}]
  %s5 = inlined_call_operand.hbm [shape: f32[2,1,128], index: 5, kind: output, shape index: {}]
  %s6 = sld [smem:[#allocation0]]
  $region53: #{tpu_custom_call.1} parent=0
    _
  %s8 = ssub.s32 1, %s6
  %s9 = scalar_select 0, %s8, %s6
  $region1: #{tpu_custom_call.1} parent=0
    #allocation2 [shape = 'u8[1024]{0}', space=vmem, size = 0x400, scoped, tag = 'output window, operand 0']
    #allocation3 [shape = 's32[2]{0}', space=sflag, size = 0x8, scoped, tag = 'scoped memory for tpu_custom_call.1']
    %10 = vsyncpa [#allocation3], 0
    %s11 = scalar_lea.sflag [#allocation3], 1
    %12 = vsyncpa %s11, 0
    loop: start=0, step=1, limit=4
    $region2: #{tpu_custom_call.1} parent=1 // loop_pre_header
      _
    $region3: #{tpu_custom_call.1} parent=1 // loop_header
      %s14 = sphi 0, %s18
      %p15 = scmp.ge.s32.totalorder %s14, 4
      %s24 = sphi 0, %s26
      %s27 = sphi 0, %s24
      %s28 = sphi 0, %s27
      %s44 = sphi 0, %s28
      %s48 = sphi 0, %s48
      %s50 = sphi 0, %s48
      %s51 = sphi 0, %s50
      %s65 = sphi 0, %s51
      %s69 = sphi 0, %s69
      %s71 = sphi 0, %s69
      %s72 = sphi 0, %s71
      %s86 = sphi 0, %s72
      %s90 = sphi 0, %s90
      %s92 = sphi 0, %s90
      %s93 = sphi 0, %s92
      %s107 = sphi 0, %s93
      %s111 = sphi 0, %s111
      %s113 = sphi 0, %s111
      %s114 = sphi 0, %s113
      %s128 = sphi 0, %s114
      %s134 = sphi 0, %s136
      %s137 = sphi 0, %s134
      %s138 = sphi 0, %s137
      %s154 = sphi 0, %s138
    $region4: #{tpu_custom_call.1} parent=1 // loop_header_branch
      %17 = sbr.rel (%p15) target = $region8
    $region5: #{tpu_custom_call.1} parent=1 // loop_body
      %s19 = ssub.s32 %s14, 1
      %s20 = ssub.s32 %s14, 2
      %s21 = sadd.s32 %s14, 1
      %s22 = ssub.s32 %s14, %s21
      %p23 = scmp.eq.s32.totalorder %s22, 0
      %s25 = sadd.s32 %s24, 1
      %s26 = scalar_select %p23, %s24, %s25
      %p29 = pneg %p23
      %p30 = scmp.eq.s32.totalorder %s14, 1
      %p31 = por %p29, %p30
      %p32 = scmp.ne.s32.totalorder %s24, %s27
      %p33 = scmp.eq.s32.totalorder %s14, 0
      %p34 = por %p32, %p33
      %p35 = scmp.ne.s32.totalorder %s24, %s27
      %p36 = scmp.eq.s32.totalorder %s19, 1
      %p37 = por %p35, %p36
      %p38 = scmp.ne.s32.totalorder %s27, %s28
      %p39 = scmp.eq.s32.totalorder %s19, 0
      %p40 = por %p38, %p39
      %p41 = scmp.ne.s32.totalorder %s27, %s28
      %p42 = scmp.eq.s32.totalorder %s20, 1
      %p43 = por %p41, %p42
      %p45 = scmp.ne.s32.totalorder %s28, %s44
      %p46 = scmp.eq.s32.totalorder %s20, 0
      %p47 = por %p45, %p46
      %s49 = sadd.s32 %s48, 1
      %p52 = scmp.eq.s32.totalorder %s14, 1
      %p53 = scmp.ne.s32.totalorder %s48, %s50
      %p54 = scmp.eq.s32.totalorder %s14, 0
      %p55 = por %p53, %p54
      %p56 = scmp.ne.s32.totalorder %s48, %s50
      %p57 = scmp.eq.s32.totalorder %s19, 1
      %p58 = por %p56, %p57
      %p59 = scmp.ne.s32.totalorder %s50, %s51
      %p60 = scmp.eq.s32.totalorder %s19, 0
      %p61 = por %p59, %p60
      %p62 = scmp.ne.s32.totalorder %s50, %s51
      %p63 = scmp.eq.s32.totalorder %s20, 1
      %p64 = por %p62, %p63
      %p66 = scmp.ne.s32.totalorder %s51, %s65
      %p67 = scmp.eq.s32.totalorder %s20, 0
      %p68 = por %p66, %p67
      %s70 = sadd.s32 %s69, 1
      %p73 = scmp.eq.s32.totalorder %s14, 1
      %p74 = scmp.ne.s32.totalorder %s69, %s71
      %p75 = scmp.eq.s32.totalorder %s14, 0
      %p76 = por %p74, %p75
      %p77 = scmp.ne.s32.totalorder %s69, %s71
      %p78 = scmp.eq.s32.totalorder %s19, 1
      %p79 = por %p77, %p78
      %p80 = scmp.ne.s32.totalorder %s71, %s72
      %p81 = scmp.eq.s32.totalorder %s19, 0
      %p82 = por %p80, %p81
      %p83 = scmp.ne.s32.totalorder %s71, %s72
      %p84 = scmp.eq.s32.totalorder %s20, 1
      %p85 = por %p83, %p84
      %p87 = scmp.ne.s32.totalorder %s72, %s86
      %p88 = scmp.eq.s32.totalorder %s20, 0
      %p89 = por %p87, %p88
      %s91 = sadd.s32 %s90, 1
      %p94 = scmp.eq.s32.totalorder %s14, 1
      %p95 = scmp.ne.s32.totalorder %s90, %s92
      %p96 = scmp.eq.s32.totalorder %s14, 0
      %p97 = por %p95, %p96
      %p98 = scmp.ne.s32.totalorder %s90, %s92
      %p99 = scmp.eq.s32.totalorder %s19, 1
      %p100 = por %p98, %p99
      %p101 = scmp.ne.s32.totalorder %s92, %s93
      %p102 = scmp.eq.s32.totalorder %s19, 0
      %p103 = por %p101, %p102
      %p104 = scmp.ne.s32.totalorder %s92, %s93
      %p105 = scmp.eq.s32.totalorder %s20, 1
      %p106 = por %p104, %p105
      %p108 = scmp.ne.s32.totalorder %s93, %s107
      %p109 = scmp.eq.s32.totalorder %s20, 0
      %p110 = por %p108, %p109
      %s112 = sadd.s32 %s111, 1
      %p115 = scmp.eq.s32.totalorder %s14, 1
      %p116 = scmp.ne.s32.totalorder %s111, %s113
      %p117 = scmp.eq.s32.totalorder %s14, 0
      %p118 = por %p116, %p117
      %p119 = scmp.ne.s32.totalorder %s111, %s113
      %p120 = scmp.eq.s32.totalorder %s19, 1
      %p121 = por %p119, %p120
      %p122 = scmp.ne.s32.totalorder %s113, %s114
      %p123 = scmp.eq.s32.totalorder %s19, 0
      %p124 = por %p122, %p123
      %p125 = scmp.ne.s32.totalorder %s113, %s114
      %p126 = scmp.eq.s32.totalorder %s20, 1
      %p127 = por %p125, %p126
      %p129 = scmp.ne.s32.totalorder %s114, %s128
      %p130 = scmp.eq.s32.totalorder %s20, 0
      %p131 = por %p129, %p130
      %s132 = ssub.s32 %s14, %s21
      %p133 = scmp.eq.s32.totalorder %s132, 0
      %s135 = sadd.s32 %s134, 1
      %s136 = scalar_select %p133, %s134, %s135
      %p139 = pneg %p133
      %p140 = scmp.eq.s32.totalorder %s14, 1
      %p141 = por %p139, %p140
      %p142 = scmp.ne.s32.totalorder %s134, %s137
      %p143 = scmp.eq.s32.totalorder %s14, 0
      %p144 = por %p142, %p143
      %p145 = scmp.ne.s32.totalorder %s134, %s137
      %p146 = scmp.eq.s32.totalorder %s19, 1
      %p147 = por %p145, %p146
      %p148 = scmp.ne.s32.totalorder %s137, %s138
      %p149 = scmp.eq.s32.totalorder %s19, 0
      %p150 = por %p148, %p149
      %p151 = scmp.ne.s32.totalorder %s137, %s138
      %p152 = scmp.eq.s32.totalorder %s20, 1
      %p153 = por %p151, %p152
      %p155 = scmp.ne.s32.totalorder %s138, %s154
      %p156 = scmp.eq.s32.totalorder %s20, 0
      %p157 = por %p155, %p156
      %p158 = scmp.le.s32.totalorder 1, %s14
      %p159 = scmp.lt.s32.totalorder %s14, 3
      %p160 = pnand %p158, %p159
      %p161 = pneg %p160
      // Predicated region
      $region9: #{tpu_custom_call.1} parent=5 // pred_check
        _
      $region10: #{tpu_custom_call.1} parent=5 // pred_check_branch
        %163 = sbr.rel (%p160) target = $region12
      $region11: #{tpu_custom_call.1} parent=5 // pred_region
        %s164 = ssub.s32 %s14, 1
        // Predicated region
        $region13: #{tpu_custom_call.1} parent=11 // pred_check
          %p165 = pneg %p61
        $region14: #{tpu_custom_call.1} parent=11 // pred_check_branch
          %167 = sbr.rel (%p165) target = $region16
        $region15: #{tpu_custom_call.1} parent=11 // pred_region
          _
        $region16: #{tpu_custom_call.1} parent=11 // pred_fallthru
          _
        // Predicated region
        $region17: #{tpu_custom_call.1} parent=11 // pred_check
          %p168 = pneg %p82
        $region18: #{tpu_custom_call.1} parent=11 // pred_check_branch
          %170 = sbr.rel (%p168) target = $region20
        $region19: #{tpu_custom_call.1} parent=11 // pred_region
          _
        $region20: #{tpu_custom_call.1} parent=11 // pred_fallthru
          _
        // Predicated region
        $region21: #{tpu_custom_call.1} parent=11 // pred_check
          %p171 = pneg %p103
        $region22: #{tpu_custom_call.1} parent=11 // pred_check_branch
          %173 = sbr.rel (%p171) target = $region24
        $region23: #{tpu_custom_call.1} parent=11 // pred_region
          _
        $region24: #{tpu_custom_call.1} parent=11 // pred_fallthru
          _
        // Predicated region
        $region25: #{tpu_custom_call.1} parent=11 // pred_check
          %p174 = pneg %p124
        $region26: #{tpu_custom_call.1} parent=11 // pred_check_branch
          %176 = sbr.rel (%p174) target = $region28
        $region27: #{tpu_custom_call.1} parent=11 // pred_region
          _
        $region28: #{tpu_custom_call.1} parent=11 // pred_fallthru
          _
      $region12: #{tpu_custom_call.1} parent=5 // pred_fallthru
        _
      %p177 = scmp.lt.s32.totalorder %s14, 2
      // Predicated region
      $region29: #{tpu_custom_call.1} parent=5 // pred_check
        %p178 = pneg %p177
      $region30: #{tpu_custom_call.1} parent=5 // pred_check_branch
        %180 = sbr.rel (%p178) target = $region32
      $region31: #{tpu_custom_call.1} parent=5 // pred_region
        // Predicated region
        $region33: #{tpu_custom_call.1} parent=31 // pred_check
          %p181 = pneg %p34
        $region34: #{tpu_custom_call.1} parent=31 // pred_check_branch
          %183 = sbr.rel (%p181) target = $region36
        $region35: #{tpu_custom_call.1} parent=31 // pred_region
          %p184 = scmp.lt.s32.totalorder %s14, 1
          %s185 = scalar_select %p184, %s14, 1
          %s186 = smul.addr %s185, 54
          %s187 = smul.addr %s186, 8
          %s188 = scalar_lea.vmem %s0, %s187
        $region36: #{tpu_custom_call.1} parent=31 // pred_fallthru
          _
      $region32: #{tpu_custom_call.1} parent=5 // pred_fallthru
        _
      %p189 = scmp.le.s32.totalorder 1, %s14
      %p190 = scmp.lt.s32.totalorder %s14, 3
      %p191 = pnand %p189, %p190
      %p192 = pneg %p191
      // Predicated region
      $region37: #{tpu_custom_call.1} parent=5 // pred_check
        _
      $region38: #{tpu_custom_call.1} parent=5 // pred_check_branch
        %194 = sbr.rel (%p191) target = $region40
      $region39: #{tpu_custom_call.1} parent=5 // pred_region
        %s195 = ssub.s32 %s14, 1
        %p196 = scmp.lt.s32.totalorder %s19, 1
        %s197 = scalar_select %p196, %s19, 1
        %s198 = smul.addr %s197, 54
        %s199 = smul.addr %s198, 8
        %s200 = scalar_lea.vmem %s0, %s199
        %p201 = pneg %p40
        %p202 = pneg %p37
        %p203 = pneg %p61
        %p204 = pneg %p58
        %p205 = pneg %p82
        %p206 = pneg %p79
        %p207 = pneg %p103
        %p208 = pneg %p100
        %p209 = pneg %p124
        %p210 = pneg %p121
        %p211 = pneg %p150
        %p212 = pneg %p147
        %s213 = sand.u32 %s137, 1
        %s214 = scalar_lea.sflag [#allocation3], %s213
        %s215 = sand.u32 %s137, 1
        %s216 = scalar_lea.vmem [#allocation2], %s215
        %p217 = scmp.lt.s32.totalorder %s19, 1
        %s218 = scalar_select %p217, %s19, 1
        %s219 = smul.addr %s218, 54
        %s220 = smul.addr %s219, 8
        %s221 = scalar_lea.vmem %s0, %s220
        %v223 = vld [vmem:[%s221] sm:$0xff]
        %v224 = vld [vmem:[%s221 + $0x8] sm:$0xff]
        %v225 = vld [vmem:[%s221 + $0x18] sm:$0xff]
        %v226 = vld [vmem:[%s221 + $0x20] sm:$0xff]
        %v227 = vld [vmem:[%s221 + $0x30] sm:$0xff]
        %v228 = vld [vmem:[%s221 + $0x38] sm:$0xff]
        %v229 = vld [vmem:[%s221 + $0x48] sm:$0xff]
        %v230 = vld [vmem:[%s221 + $0x50] sm:$0xff]
        %v231 = vld [vmem:[%s221 + $0x60] sm:$0xff]
        %v232 = vld [vmem:[%s221 + $0x68] sm:$0xff]
        %v233 = vld [vmem:[%s221 + $0x78] sm:$0xff]
        %v234 = vld [vmem:[%s221 + $0x80] sm:$0xff]
        %v235 = vld [vmem:[%s221 + $0x90] sm:$0xff]
        %v236 = vld [vmem:[%s221 + $0x98] sm:$0xff]
        %v237 = vld [vmem:[%s221 + $0xa8] sm:$0xff]
        %v238 = vld [vmem:[%s221 + $0xb0] sm:$0xff]
        %v239 = vld [vmem:[%s221 + $0xc0] sm:$0xff]
        %v240 = vld [vmem:[%s221 + $0xc8] sm:$0xff]
        %v241 = vld [vmem:[%s221 + $0xd8] sm:$0xff]
        %v242 = vld [vmem:[%s221 + $0xe0] sm:$0xff]
        %v243 = vld [vmem:[%s221 + $0xf0] sm:$0xff]
        %v244 = vld [vmem:[%s221 + $0xf8] sm:$0xff]
        %v245 = vld [vmem:[%s221 + $0x108] sm:$0xff]
        %v246 = vld [vmem:[%s221 + $0x110] sm:$0xff]
        %v247 = vld [vmem:[%s221 + $0x120] sm:$0xff]
        %v248 = vld [vmem:[%s221 + $0x128] sm:$0xff]
        %v249 = vld [vmem:[%s221 + $0x138] sm:$0xff]
        %v250 = vld [vmem:[%s221 + $0x140] sm:$0xff]
        %v251 = vld [vmem:[%s221 + $0x150] sm:$0xff]
        %v252 = vld [vmem:[%s221 + $0x158] sm:$0xff]
        %v253 = vld [vmem:[%s221 + $0x168] sm:$0xff]
        %v254 = vld [vmem:[%s221 + $0x170] sm:$0xff]
        %v255 = vpack.c.bf16 %v224, %v223
        %v256 = vpack.c.bf16 %v226, %v225
        %v257 = vpack.c.bf16 %v228, %v227
        %v258 = vpack.c.bf16 %v230, %v229
        %v259 = vpack.c.bf16 %v232, %v231
        %v260 = vpack.c.bf16 %v234, %v233
        %v261 = vpack.c.bf16 %v236, %v235
        %v262 = vpack.c.bf16 %v238, %v237
        %v263 = vpack.c.bf16 %v240, %v239
        %v264 = vpack.c.bf16 %v242, %v241
        %v265 = vpack.c.bf16 %v244, %v243
        %v266 = vpack.c.bf16 %v246, %v245
        %v267 = vpack.c.bf16 %v248, %v247
        %v268 = vpack.c.bf16 %v250, %v249
        %v269 = vpack.c.bf16 %v252, %v251
        %v270 = vpack.c.bf16 %v254, %v253
        %v271 = vld [vmem:[%s1] sm:$0x3]
        %v272 = vld [vmem:[%s221 + $0x1] sm:$0xff]
        %v273 = vld [vmem:[%s221 + $0x9] sm:$0xff]
        %v274 = vld [vmem:[%s221 + $0x19] sm:$0xff]
        %v275 = vld [vmem:[%s221 + $0x21] sm:$0xff]
        %v276 = vld [vmem:[%s221 + $0x31] sm:$0xff]
        %v277 = vld [vmem:[%s221 + $0x39] sm:$0xff]
        %v278 = vld [vmem:[%s221 + $0x49] sm:$0xff]
        %v279 = vld [vmem:[%s221 + $0x51] sm:$0xff]
        %v280 = vld [vmem:[%s221 + $0x61] sm:$0xff]
        %v281 = vld [vmem:[%s221 + $0x69] sm:$0xff]
        %v282 = vld [vmem:[%s221 + $0x79] sm:$0xff]
        %v283 = vld [vmem:[%s221 + $0x81] sm:$0xff]
        %v284 = vld [vmem:[%s221 + $0x91] sm:$0xff]
        %v285 = vld [vmem:[%s221 + $0x99] sm:$0xff]
        %v286 = vld [vmem:[%s221 + $0xa9] sm:$0xff]
        %v287 = vld [vmem:[%s221 + $0xb1] sm:$0xff]
        %v288 = vld [vmem:[%s221 + $0xc1] sm:$0xff]
        %v289 = vld [vmem:[%s221 + $0xc9] sm:$0xff]
        %v290 = vld [vmem:[%s221 + $0xd9] sm:$0xff]
        %v291 = vld [vmem:[%s221 + $0xe1] sm:$0xff]
        %v292 = vld [vmem:[%s221 + $0xf1] sm:$0xff]
        %v293 = vld [vmem:[%s221 + $0xf9] sm:$0xff]
        %v294 = vld [vmem:[%s221 + $0x109] sm:$0xff]
        %v295 = vld [vmem:[%s221 + $0x111] sm:$0xff]
        %v296 = vld [vmem:[%s221 + $0x121] sm:$0xff]
        %v297 = vld [vmem:[%s221 + $0x129] sm:$0xff]
        %v298 = vld [vmem:[%s221 + $0x139] sm:$0xff]
        %v299 = vld [vmem:[%s221 + $0x141] sm:$0xff]
        %v300 = vld [vmem:[%s221 + $0x151] sm:$0xff]
        %v301 = vld [vmem:[%s221 + $0x159] sm:$0xff]
        %v302 = vld [vmem:[%s221 + $0x169] sm:$0xff]
        %v303 = vld [vmem:[%s221 + $0x171] sm:$0xff]
        %v304 = vpack.c.bf16 %v273, %v272
        %v305 = vpack.c.bf16 %v275, %v274
        %v306 = vpack.c.bf16 %v277, %v276
        %v307 = vpack.c.bf16 %v279, %v278
        %v308 = vpack.c.bf16 %v281, %v280
        %v309 = vpack.c.bf16 %v283, %v282
        %v310 = vpack.c.bf16 %v285, %v284
        %v311 = vpack.c.bf16 %v287, %v286
        %v312 = vpack.c.bf16 %v289, %v288
        %v313 = vpack.c.bf16 %v291, %v290
        %v314 = vpack.c.bf16 %v293, %v292
        %v315 = vpack.c.bf16 %v295, %v294
        %v316 = vpack.c.bf16 %v297, %v296
        %v317 = vpack.c.bf16 %v299, %v298
        %v318 = vpack.c.bf16 %v301, %v300
        %v319 = vpack.c.bf16 %v303, %v302
        %s320 = scalar_lea.vmem %s1, 2
        %v321 = vld [vmem:[%s320] sm:$0x3]
        %vm322 = vcmask 31744
        %v324 = vsel %vm322, %v304, 0
        %v327 = vsel %vm322, %v305, 0
        %v330 = vsel %vm322, %v306, 0
        %v333 = vsel %vm322, %v307, 0
        %v336 = vsel %vm322, %v308, 0
        %v339 = vsel %vm322, %v309, 0
        %v342 = vsel %vm322, %v310, 0
        %v345 = vsel %vm322, %v311, 0
        %v348 = vsel %vm322, %v312, 0
        %v351 = vsel %vm322, %v313, 0
        %v354 = vsel %vm322, %v314, 0
        %v357 = vsel %vm322, %v315, 0
        %v360 = vsel %vm322, %v316, 0
        %v363 = vsel %vm322, %v317, 0
        %v366 = vsel %vm322, %v318, 0
        %v369 = vsel %vm322, %v319, 0
        %vm371 = vcmask 1041408
        %v373 = vsel %vm371, %v321, 0
        %375 = vmatpush.bf16.msra.mxu0 0
        %376 = vmatpush.bf16.msra.mxu0 0
        %377 = vmatpush.bf16.msra.mxu0 0
        %378 = vmatpush.bf16.msra.mxu0 0
        %379 = vmatpush.bf16.msra.mxu0 0
        %380 = vmatpush.bf16.msra.mxu0 0
        %381 = vmatpush.bf16.msra.mxu0 0
        %382 = vmatpush.bf16.msra.mxu0 %v373
        %383 = vmatmul.bf16.gmra.mxu0 %v324
        %v384 = vpop.f32.mrf.mxu0
        %v385 = vadd.f32 0.0, %v384
        %v386 = vpop.f32.mrf.mxu0
        %v387 = vadd.f32 0.0, %v386
        %388 = vmatmul.bf16.gmra.mxu0 %v327
        %v389 = vpop.f32.mrf.mxu0
        %v390 = vadd.f32 0.0, %v389
        %v391 = vpop.f32.mrf.mxu0
        %v392 = vadd.f32 0.0, %v391
        %393 = vmatmul.bf16.gmra.mxu0 %v330
        %v394 = vpop.f32.mrf.mxu0
        %v395 = vadd.f32 0.0, %v394
        %v396 = vpop.f32.mrf.mxu0
        %v397 = vadd.f32 0.0, %v396
        %398 = vmatmul.bf16.gmra.mxu0 %v333
        %v399 = vpop.f32.mrf.mxu0
        %v400 = vadd.f32 0.0, %v399
        %v401 = vpop.f32.mrf.mxu0
        %v402 = vadd.f32 0.0, %v401
        %403 = vmatmul.bf16.gmra.mxu0 %v336
        %v404 = vpop.f32.mrf.mxu0
        %v405 = vadd.f32 0.0, %v404
        %v406 = vpop.f32.mrf.mxu0
        %v407 = vadd.f32 0.0, %v406
        %408 = vmatmul.bf16.gmra.mxu0 %v339
        %v409 = vpop.f32.mrf.mxu0
        %v410 = vadd.f32 0.0, %v409
        %v411 = vpop.f32.mrf.mxu0
        %v412 = vadd.f32 0.0, %v411
        %413 = vmatmul.bf16.gmra.mxu0 %v342
        %v414 = vpop.f32.mrf.mxu0
        %v415 = vadd.f32 0.0, %v414
        %v416 = vpop.f32.mrf.mxu0
        %v417 = vadd.f32 0.0, %v416
        %418 = vmatmul.bf16.gmra.mxu0 %v345
        %v419 = vpop.f32.mrf.mxu0
        %v420 = vadd.f32 0.0, %v419
        %v421 = vpop.f32.mrf.mxu0
        %v422 = vadd.f32 0.0, %v421
        %423 = vmatmul.bf16.gmra.mxu0 %v348
        %v424 = vpop.f32.mrf.mxu0
        %v425 = vadd.f32 0.0, %v424
        %v426 = vpop.f32.mrf.mxu0
        %v427 = vadd.f32 0.0, %v426
        %428 = vmatmul.bf16.gmra.mxu0 %v351
        %v429 = vpop.f32.mrf.mxu0
        %v430 = vadd.f32 0.0, %v429
        %v431 = vpop.f32.mrf.mxu0
        %v432 = vadd.f32 0.0, %v431
        %433 = vmatmul.bf16.gmra.mxu0 %v354
        %v434 = vpop.f32.mrf.mxu0
        %v435 = vadd.f32 0.0, %v434
        %v436 = vpop.f32.mrf.mxu0
        %v437 = vadd.f32 0.0, %v436
        %438 = vmatmul.bf16.gmra.mxu0 %v357
        %v439 = vpop.f32.mrf.mxu0
        %v440 = vadd.f32 0.0, %v439
        %v441 = vpop.f32.mrf.mxu0
        %v442 = vadd.f32 0.0, %v441
        %443 = vmatmul.bf16.gmra.mxu0 %v360
        %v444 = vpop.f32.mrf.mxu0
        %v445 = vadd.f32 0.0, %v444
        %v446 = vpop.f32.mrf.mxu0
        %v447 = vadd.f32 0.0, %v446
        %448 = vmatmul.bf16.gmra.mxu0 %v363
        %v449 = vpop.f32.mrf.mxu0
        %v450 = vadd.f32 0.0, %v449
        %v451 = vpop.f32.mrf.mxu0
        %v452 = vadd.f32 0.0, %v451
        %453 = vmatmul.bf16.gmra.mxu0 %v366
        %v454 = vpop.f32.mrf.mxu0
        %v455 = vadd.f32 0.0, %v454
        %v456 = vpop.f32.mrf.mxu0
        %v457 = vadd.f32 0.0, %v456
        %458 = vmatmul.bf16.gmra.mxu0 %v369
        %v459 = vpop.f32.mrf.mxu0
        %v460 = vadd.f32 0.0, %v459
        %v461 = vpop.f32.mrf.mxu0
        %v462 = vadd.f32 0.0, %v461
        %463 = vdwg.mxu0
        %v465 = vsel %vm322, %v255, 0
        %v468 = vsel %vm322, %v256, 0
        %v471 = vsel %vm322, %v257, 0
        %v474 = vsel %vm322, %v258, 0
        %v477 = vsel %vm322, %v259, 0
        %v480 = vsel %vm322, %v260, 0
        %v483 = vsel %vm322, %v261, 0
        %v486 = vsel %vm322, %v262, 0
        %v489 = vsel %vm322, %v263, 0
        %v492 = vsel %vm322, %v264, 0
        %v495 = vsel %vm322, %v265, 0
        %v498 = vsel %vm322, %v266, 0
        %v501 = vsel %vm322, %v267, 0
        %v504 = vsel %vm322, %v268, 0
        %v507 = vsel %vm322, %v269, 0
        %v510 = vsel %vm322, %v270, 0
        %v513 = vsel %vm371, %v271, 0
        %515 = vmatpush.bf16.msra.mxu0 0
        %516 = vmatpush.bf16.msra.mxu0 0
        %517 = vmatpush.bf16.msra.mxu0 0
        %518 = vmatpush.bf16.msra.mxu0 0
        %519 = vmatpush.bf16.msra.mxu0 0
        %520 = vmatpush.bf16.msra.mxu0 0
        %521 = vmatpush.bf16.msra.mxu0 0
        %522 = vmatpush.bf16.msra.mxu0 %v513
        %523 = vmatmul.bf16.gmra.mxu0 %v465
        %v524 = vpop.f32.mrf.mxu0
        %v525 = vadd.f32 %v385, %v524
        %v526 = vpop.f32.mrf.mxu0
        %v527 = vadd.f32 %v387, %v526
        %528 = vmatmul.bf16.gmra.mxu0 %v468
        %v529 = vpop.f32.mrf.mxu0
        %v530 = vadd.f32 %v390, %v529
        %v531 = vpop.f32.mrf.mxu0
        %v532 = vadd.f32 %v392, %v531
        %533 = vmatmul.bf16.gmra.mxu0 %v471
        %v534 = vpop.f32.mrf.mxu0
        %v535 = vadd.f32 %v395, %v534
        %v536 = vpop.f32.mrf.mxu0
        %v537 = vadd.f32 %v397, %v536
        %538 = vmatmul.bf16.gmra.mxu0 %v474
        %v539 = vpop.f32.mrf.mxu0
        %v540 = vadd.f32 %v400, %v539
        %v541 = vpop.f32.mrf.mxu0
        %v542 = vadd.f32 %v402, %v541
        %543 = vmatmul.bf16.gmra.mxu0 %v477
        %v544 = vpop.f32.mrf.mxu0
        %v545 = vadd.f32 %v405, %v544
        %v546 = vpop.f32.mrf.mxu0
        %v547 = vadd.f32 %v407, %v546
        %548 = vmatmul.bf16.gmra.mxu0 %v480
        %v549 = vpop.f32.mrf.mxu0
        %v550 = vadd.f32 %v410, %v549
        %v551 = vpop.f32.mrf.mxu0
        %v552 = vadd.f32 %v412, %v551
        %553 = vmatmul.bf16.gmra.mxu0 %v483
        %v554 = vpop.f32.mrf.mxu0
        %v555 = vadd.f32 %v415, %v554
        %v556 = vpop.f32.mrf.mxu0
        %v557 = vadd.f32 %v417, %v556
        %558 = vmatmul.bf16.gmra.mxu0 %v486
        %v559 = vpop.f32.mrf.mxu0
        %v560 = vadd.f32 %v420, %v559
        %v561 = vpop.f32.mrf.mxu0
        %v562 = vadd.f32 %v422, %v561
        %563 = vmatmul.bf16.gmra.mxu0 %v489
        %v564 = vpop.f32.mrf.mxu0
        %v565 = vadd.f32 %v425, %v564
        %v566 = vpop.f32.mrf.mxu0
        %v567 = vadd.f32 %v427, %v566
        %568 = vmatmul.bf16.gmra.mxu0 %v492
        %v569 = vpop.f32.mrf.mxu0
        %v570 = vadd.f32 %v430, %v569
        %v571 = vpop.f32.mrf.mxu0
        %v572 = vadd.f32 %v432, %v571
        %573 = vmatmul.bf16.gmra.mxu0 %v495
        %v574 = vpop.f32.mrf.mxu0
        %v575 = vadd.f32 %v435, %v574
        %v576 = vpop.f32.mrf.mxu0
        %v577 = vadd.f32 %v437, %v576
        %578 = vmatmul.bf16.gmra.mxu0 %v498
        %v579 = vpop.f32.mrf.mxu0
        %v580 = vadd.f32 %v440, %v579
        %v581 = vpop.f32.mrf.mxu0
        %v582 = vadd.f32 %v442, %v581
        %583 = vmatmul.bf16.gmra.mxu0 %v501
        %v584 = vpop.f32.mrf.mxu0
        %v585 = vadd.f32 %v445, %v584
        %v586 = vpop.f32.mrf.mxu0
        %v587 = vadd.f32 %v447, %v586
        %588 = vmatmul.bf16.gmra.mxu0 %v504
        %v589 = vpop.f32.mrf.mxu0
        %v590 = vadd.f32 %v450, %v589
        %v591 = vpop.f32.mrf.mxu0
        %v592 = vadd.f32 %v452, %v591
        %593 = vmatmul.bf16.gmra.mxu0 %v507
        %v594 = vpop.f32.mrf.mxu0
        %v595 = vadd.f32 %v455, %v594
        %v596 = vpop.f32.mrf.mxu0
        %v597 = vadd.f32 %v457, %v596
        %598 = vmatmul.bf16.gmra.mxu0 %v510
        %v599 = vpop.f32.mrf.mxu0
        %v600 = vadd.f32 %v460, %v599
        %v601 = vpop.f32.mrf.mxu0
        %v602 = vadd.f32 %v462, %v601
        %603 = vdwg.mxu0
        %v604 = vld [vmem:[%s221 + $0x2] sm:$0xff]
        %v605 = vld [vmem:[%s221 + $0xa] sm:$0xff]
        %v606 = vld [vmem:[%s221 + $0x1a] sm:$0xff]
        %v607 = vld [vmem:[%s221 + $0x22] sm:$0xff]
        %v608 = vld [vmem:[%s221 + $0x32] sm:$0xff]
        %v609 = vld [vmem:[%s221 + $0x3a] sm:$0xff]
        %v610 = vld [vmem:[%s221 + $0x4a] sm:$0xff]
        %v611 = vld [vmem:[%s221 + $0x52] sm:$0xff]
        %v612 = vld [vmem:[%s221 + $0x62] sm:$0xff]
        %v613 = vld [vmem:[%s221 + $0x6a] sm:$0xff]
        %v614 = vld [vmem:[%s221 + $0x7a] sm:$0xff]
        %v615 = vld [vmem:[%s221 + $0x82] sm:$0xff]
        %v616 = vld [vmem:[%s221 + $0x92] sm:$0xff]
        %v617 = vld [vmem:[%s221 + $0x9a] sm:$0xff]
        %v618 = vld [vmem:[%s221 + $0xaa] sm:$0xff]
        %v619 = vld [vmem:[%s221 + $0xb2] sm:$0xff]
        %v620 = vld [vmem:[%s221 + $0xc2] sm:$0xff]
        %v621 = vld [vmem:[%s221 + $0xca] sm:$0xff]
        %v622 = vld [vmem:[%s221 + $0xda] sm:$0xff]
        %v623 = vld [vmem:[%s221 + $0xe2] sm:$0xff]
        %v624 = vld [vmem:[%s221 + $0xf2] sm:$0xff]
        %v625 = vld [vmem:[%s221 + $0xfa] sm:$0xff]
        %v626 = vld [vmem:[%s221 + $0x10a] sm:$0xff]
        %v627 = vld [vmem:[%s221 + $0x112] sm:$0xff]
        %v628 = vld [vmem:[%s221 + $0x122] sm:$0xff]
        %v629 = vld [vmem:[%s221 + $0x12a] sm:$0xff]
        %v630 = vld [vmem:[%s221 + $0x13a] sm:$0xff]
        %v631 = vld [vmem:[%s221 + $0x142] sm:$0xff]
        %v632 = vld [vmem:[%s221 + $0x152] sm:$0xff]
        %v633 = vld [vmem:[%s221 + $0x15a] sm:$0xff]
        %v634 = vld [vmem:[%s221 + $0x16a] sm:$0xff]
        %v635 = vld [vmem:[%s221 + $0x172] sm:$0xff]
        %v636 = vpack.c.bf16 %v605, %v604
        %v637 = vpack.c.bf16 %v607, %v606
        %v638 = vpack.c.bf16 %v609, %v608
        %v639 = vpack.c.bf16 %v611, %v610
        %v640 = vpack.c.bf16 %v613, %v612
        %v641 = vpack.c.bf16 %v615, %v614
        %v642 = vpack.c.bf16 %v617, %v616
        %v643 = vpack.c.bf16 %v619, %v618
        %v644 = vpack.c.bf16 %v621, %v620
        %v645 = vpack.c.bf16 %v623, %v622
        %v646 = vpack.c.bf16 %v625, %v624
        %v647 = vpack.c.bf16 %v627, %v626
        %v648 = vpack.c.bf16 %v629, %v628
        %v649 = vpack.c.bf16 %v631, %v630
        %v650 = vpack.c.bf16 %v633, %v632
        %v651 = vpack.c.bf16 %v635, %v634
        %s652 = scalar_lea.vmem %s1, 4
        %v653 = vld [vmem:[%s652] sm:$0x3]
        %v655 = vsel %vm322, %v636, 0
        %v658 = vsel %vm322, %v637, 0
        %v661 = vsel %vm322, %v638, 0
        %v664 = vsel %vm322, %v639, 0
        %v667 = vsel %vm322, %v640, 0
        %v670 = vsel %vm322, %v641, 0
        %v673 = vsel %vm322, %v642, 0
        %v676 = vsel %vm322, %v643, 0
        %v679 = vsel %vm322, %v644, 0
        %v682 = vsel %vm322, %v645, 0
        %v685 = vsel %vm322, %v646, 0
        %v688 = vsel %vm322, %v647, 0
        %v691 = vsel %vm322, %v648, 0
        %v694 = vsel %vm322, %v649, 0
        %v697 = vsel %vm322, %v650, 0
        %v700 = vsel %vm322, %v651, 0
        %v703 = vsel %vm371, %v653, 0
        %705 = vmatpush.bf16.msra.mxu0 0
        %706 = vmatpush.bf16.msra.mxu0 0
        %707 = vmatpush.bf16.msra.mxu0 0
        %708 = vmatpush.bf16.msra.mxu0 0
        %709 = vmatpush.bf16.msra.mxu0 0
        %710 = vmatpush.bf16.msra.mxu0 0
        %711 = vmatpush.bf16.msra.mxu0 0
        %712 = vmatpush.bf16.msra.mxu0 %v703
        %713 = vmatmul.bf16.gmra.mxu0 %v655
        %v714 = vpop.f32.mrf.mxu0
        %v715 = vadd.f32 0.0, %v714
        %v716 = vpop.f32.mrf.mxu0
        %v717 = vadd.f32 0.0, %v716
        %718 = vmatmul.bf16.gmra.mxu0 %v658
        %v719 = vpop.f32.mrf.mxu0
        %v720 = vadd.f32 0.0, %v719
        %v721 = vpop.f32.mrf.mxu0
        %v722 = vadd.f32 0.0, %v721
        %723 = vmatmul.bf16.gmra.mxu0 %v661
        %v724 = vpop.f32.mrf.mxu0
        %v725 = vadd.f32 0.0, %v724
        %v726 = vpop.f32.mrf.mxu0
        %v727 = vadd.f32 0.0, %v726
        %728 = vmatmul.bf16.gmra.mxu0 %v664
        %v729 = vpop.f32.mrf.mxu0
        %v730 = vadd.f32 0.0, %v729
        %v731 = vpop.f32.mrf.mxu0
        %v732 = vadd.f32 0.0, %v731
        %733 = vmatmul.bf16.gmra.mxu0 %v667
        %v734 = vpop.f32.mrf.mxu0
        %v735 = vadd.f32 0.0, %v734
        %v736 = vpop.f32.mrf.mxu0
        %v737 = vadd.f32 0.0, %v736
        %738 = vmatmul.bf16.gmra.mxu0 %v670
        %v739 = vpop.f32.mrf.mxu0
        %v740 = vadd.f32 0.0, %v739
        %v741 = vpop.f32.mrf.mxu0
        %v742 = vadd.f32 0.0, %v741
        %743 = vmatmul.bf16.gmra.mxu0 %v673
        %v744 = vpop.f32.mrf.mxu0
        %v745 = vadd.f32 0.0, %v744
        %v746 = vpop.f32.mrf.mxu0
        %v747 = vadd.f32 0.0, %v746
        %748 = vmatmul.bf16.gmra.mxu0 %v676
        %v749 = vpop.f32.mrf.mxu0
        %v750 = vadd.f32 0.0, %v749
        %v751 = vpop.f32.mrf.mxu0
        %v752 = vadd.f32 0.0, %v751
        %753 = vmatmul.bf16.gmra.mxu0 %v679
        %v754 = vpop.f32.mrf.mxu0
        %v755 = vadd.f32 0.0, %v754
        %v756 = vpop.f32.mrf.mxu0
        %v757 = vadd.f32 0.0, %v756
        %758 = vmatmul.bf16.gmra.mxu0 %v682
        %v759 = vpop.f32.mrf.mxu0
        %v760 = vadd.f32 0.0, %v759
        %v761 = vpop.f32.mrf.mxu0
        %v762 = vadd.f32 0.0, %v761
        %763 = vmatmul.bf16.gmra.mxu0 %v685
        %v764 = vpop.f32.mrf.mxu0
        %v765 = vadd.f32 0.0, %v764
        %v766 = vpop.f32.mrf.mxu0
        %v767 = vadd.f32 0.0, %v766
        %768 = vmatmul.bf16.gmra.mxu0 %v688
        %v769 = vpop.f32.mrf.mxu0
        %v770 = vadd.f32 0.0, %v769
        %v771 = vpop.f32.mrf.mxu0
        %v772 = vadd.f32 0.0, %v771
        %773 = vmatmul.bf16.gmra.mxu0 %v691
        %v774 = vpop.f32.mrf.mxu0
        %v775 = vadd.f32 0.0, %v774
        %v776 = vpop.f32.mrf.mxu0
        %v777 = vadd.f32 0.0, %v776
        %778 = vmatmul.bf16.gmra.mxu0 %v694
        %v779 = vpop.f32.mrf.mxu0
        %v780 = vadd.f32 0.0, %v779
        %v781 = vpop.f32.mrf.mxu0
        %v782 = vadd.f32 0.0, %v781
        %783 = vmatmul.bf16.gmra.mxu0 %v697
        %v784 = vpop.f32.mrf.mxu0
        %v785 = vadd.f32 0.0, %v784
        %v786 = vpop.f32.mrf.mxu0
        %v787 = vadd.f32 0.0, %v786
        %788 = vmatmul.bf16.gmra.mxu0 %v700
        %v789 = vpop.f32.mrf.mxu0
        %v790 = vadd.f32 0.0, %v789
        %v791 = vpop.f32.mrf.mxu0
        %v792 = vadd.f32 0.0, %v791
        %793 = vdwg.mxu0
        %v794 = vadd.f32 %v525, %v715
        %v795 = vadd.f32 %v527, %v717
        %v796 = vadd.f32 %v530, %v720
        %v797 = vadd.f32 %v532, %v722
        %v798 = vadd.f32 %v535, %v725
        %v799 = vadd.f32 %v537, %v727
        %v800 = vadd.f32 %v540, %v730
        %v801 = vadd.f32 %v542, %v732
        %v802 = vadd.f32 %v545, %v735
        %v803 = vadd.f32 %v547, %v737
        %v804 = vadd.f32 %v550, %v740
        %v805 = vadd.f32 %v552, %v742
        %v806 = vadd.f32 %v555, %v745
        %v807 = vadd.f32 %v557, %v747
        %v808 = vadd.f32 %v560, %v750
        %v809 = vadd.f32 %v562, %v752
        %v810 = vadd.f32 %v565, %v755
        %v811 = vadd.f32 %v567, %v757
        %v812 = vadd.f32 %v570, %v760
        %v813 = vadd.f32 %v572, %v762
        %v814 = vadd.f32 %v575, %v765
        %v815 = vadd.f32 %v577, %v767
        %v816 = vadd.f32 %v580, %v770
        %v817 = vadd.f32 %v582, %v772
        %v818 = vadd.f32 %v585, %v775
        %v819 = vadd.f32 %v587, %v777
        %v820 = vadd.f32 %v590, %v780
        %v821 = vadd.f32 %v592, %v782
        %v822 = vadd.f32 %v595, %v785
        %v823 = vadd.f32 %v597, %v787
        %v824 = vadd.f32 %v600, %v790
        %v825 = vadd.f32 %v602, %v792
        %s826 = scalar_lea.vmem %s221, 24
        %v827 = vld [vmem:[%s826] sm:$0xff]
        %v828 = vld [vmem:[%s826 + $0x8] sm:$0xff]
        %v829 = vld [vmem:[%s826 + $0x18] sm:$0xff]
        %v830 = vld [vmem:[%s826 + $0x20] sm:$0xff]
        %v831 = vld [vmem:[%s826 + $0x30] sm:$0xff]
        %v832 = vld [vmem:[%s826 + $0x38] sm:$0xff]
        %v833 = vld [vmem:[%s826 + $0x48] sm:$0xff]
        %v834 = vld [vmem:[%s826 + $0x50] sm:$0xff]
        %v835 = vld [vmem:[%s826 + $0x60] sm:$0xff]
        %v836 = vld [vmem:[%s826 + $0x68] sm:$0xff]
        %v837 = vld [vmem:[%s826 + $0x78] sm:$0xff]
        %v838 = vld [vmem:[%s826 + $0x80] sm:$0xff]
        %v839 = vld [vmem:[%s826 + $0x90] sm:$0xff]
        %v840 = vld [vmem:[%s826 + $0x98] sm:$0xff]
        %v841 = vld [vmem:[%s826 + $0xa8] sm:$0xff]
        %v842 = vld [vmem:[%s826 + $0xb0] sm:$0xff]
        %v843 = vld [vmem:[%s826 + $0xc0] sm:$0xff]
        %v844 = vld [vmem:[%s826 + $0xc8] sm:$0xff]
        %v845 = vld [vmem:[%s826 + $0xd8] sm:$0xff]
        %v846 = vld [vmem:[%s826 + $0xe0] sm:$0xff]
        %v847 = vld [vmem:[%s826 + $0xf0] sm:$0xff]
        %v848 = vld [vmem:[%s826 + $0xf8] sm:$0xff]
        %v849 = vld [vmem:[%s826 + $0x108] sm:$0xff]
        %v850 = vld [vmem:[%s826 + $0x110] sm:$0xff]
        %v851 = vld [vmem:[%s826 + $0x120] sm:$0xff]
        %v852 = vld [vmem:[%s826 + $0x128] sm:$0xff]
        %v853 = vld [vmem:[%s826 + $0x138] sm:$0xff]
        %v854 = vld [vmem:[%s826 + $0x140] sm:$0xff]
        %v855 = vld [vmem:[%s826 + $0x150] sm:$0xff]
        %v856 = vld [vmem:[%s826 + $0x158] sm:$0xff]
        %v857 = vld [vmem:[%s826 + $0x168] sm:$0xff]
        %v858 = vld [vmem:[%s826 + $0x170] sm:$0xff]
        %v859 = vpack.c.bf16 %v828, %v827
        %v860 = vpack.c.bf16 %v830, %v829
        %v861 = vpack.c.bf16 %v832, %v831
        %v862 = vpack.c.bf16 %v834, %v833
        %v863 = vpack.c.bf16 %v836, %v835
        %v864 = vpack.c.bf16 %v838, %v837
        %v865 = vpack.c.bf16 %v840, %v839
        %v866 = vpack.c.bf16 %v842, %v841
        %v867 = vpack.c.bf16 %v844, %v843
        %v868 = vpack.c.bf16 %v846, %v845
        %v869 = vpack.c.bf16 %v848, %v847
        %v870 = vpack.c.bf16 %v850, %v849
        %v871 = vpack.c.bf16 %v852, %v851
        %v872 = vpack.c.bf16 %v854, %v853
        %v873 = vpack.c.bf16 %v856, %v855
        %v874 = vpack.c.bf16 %v858, %v857
        %s875 = scalar_lea.vmem %s1, 6
        %v876 = vld [vmem:[%s875] sm:$0x3]
        %v878 = vsel %vm322, %v859, 0
        %v881 = vsel %vm322, %v860, 0
        %v884 = vsel %vm322, %v861, 0
        %v887 = vsel %vm322, %v862, 0
        %v890 = vsel %vm322, %v863, 0
        %v893 = vsel %vm322, %v864, 0
        %v896 = vsel %vm322, %v865, 0
        %v899 = vsel %vm322, %v866, 0
        %v902 = vsel %vm322, %v867, 0
        %v905 = vsel %vm322, %v868, 0
        %v908 = vsel %vm322, %v869, 0
        %v911 = vsel %vm322, %v870, 0
        %v914 = vsel %vm322, %v871, 0
        %v917 = vsel %vm322, %v872, 0
        %v920 = vsel %vm322, %v873, 0
        %v923 = vsel %vm322, %v874, 0
        %v926 = vsel %vm371, %v876, 0
        %928 = vmatpush.bf16.msra.mxu0 0
        %929 = vmatpush.bf16.msra.mxu0 0
        %930 = vmatpush.bf16.msra.mxu0 0
        %931 = vmatpush.bf16.msra.mxu0 0
        %932 = vmatpush.bf16.msra.mxu0 0
        %933 = vmatpush.bf16.msra.mxu0 0
        %934 = vmatpush.bf16.msra.mxu0 0
        %935 = vmatpush.bf16.msra.mxu0 %v926
        %936 = vmatmul.bf16.gmra.mxu0 %v878
        %v937 = vpop.f32.mrf.mxu0
        %v938 = vadd.f32 0.0, %v937
        %v939 = vpop.f32.mrf.mxu0
        %v940 = vadd.f32 0.0, %v939
        %941 = vmatmul.bf16.gmra.mxu0 %v881
        %v942 = vpop.f32.mrf.mxu0
        %v943 = vadd.f32 0.0, %v942
        %v944 = vpop.f32.mrf.mxu0
        %v945 = vadd.f32 0.0, %v944
        %946 = vmatmul.bf16.gmra.mxu0 %v884
        %v947 = vpop.f32.mrf.mxu0
        %v948 = vadd.f32 0.0, %v947
        %v949 = vpop.f32.mrf.mxu0
        %v950 = vadd.f32 0.0, %v949
        %951 = vmatmul.bf16.gmra.mxu0 %v887
        %v952 = vpop.f32.mrf.mxu0
        %v953 = vadd.f32 0.0, %v952
        %v954 = vpop.f32.mrf.mxu0
        %v955 = vadd.f32 0.0, %v954
        %956 = vmatmul.bf16.gmra.mxu0 %v890
        %v957 = vpop.f32.mrf.mxu0
        %v958 = vadd.f32 0.0, %v957
        %v959 = vpop.f32.mrf.mxu0
        %v960 = vadd.f32 0.0, %v959
        %961 = vmatmul.bf16.gmra.mxu0 %v893
        %v962 = vpop.f32.mrf.mxu0
        %v963 = vadd.f32 0.0, %v962
        %v964 = vpop.f32.mrf.mxu0
        %v965 = vadd.f32 0.0, %v964
        %966 = vmatmul.bf16.gmra.mxu0 %v896
        %v967 = vpop.f32.mrf.mxu0
        %v968 = vadd.f32 0.0, %v967
        %v969 = vpop.f32.mrf.mxu0
        %v970 = vadd.f32 0.0, %v969
        %971 = vmatmul.bf16.gmra.mxu0 %v899
        %v972 = vpop.f32.mrf.mxu0
        %v973 = vadd.f32 0.0, %v972
        %v974 = vpop.f32.mrf.mxu0
        %v975 = vadd.f32 0.0, %v974
        %976 = vmatmul.bf16.gmra.mxu0 %v902
        %v977 = vpop.f32.mrf.mxu0
        %v978 = vadd.f32 0.0, %v977
        %v979 = vpop.f32.mrf.mxu0
        %v980 = vadd.f32 0.0, %v979
        %981 = vmatmul.bf16.gmra.mxu0 %v905
        %v982 = vpop.f32.mrf.mxu0
        %v983 = vadd.f32 0.0, %v982
        %v984 = vpop.f32.mrf.mxu0
        %v985 = vadd.f32 0.0, %v984
        %986 = vmatmul.bf16.gmra.mxu0 %v908
        %v987 = vpop.f32.mrf.mxu0
        %v988 = vadd.f32 0.0, %v987
        %v989 = vpop.f32.mrf.mxu0
        %v990 = vadd.f32 0.0, %v989
        %991 = vmatmul.bf16.gmra.mxu0 %v911
        %v992 = vpop.f32.mrf.mxu0
        %v993 = vadd.f32 0.0, %v992
        %v994 = vpop.f32.mrf.mxu0
        %v995 = vadd.f32 0.0, %v994
        %996 = vmatmul.bf16.gmra.mxu0 %v914
        %v997 = vpop.f32.mrf.mxu0
        %v998 = vadd.f32 0.0, %v997
        %v999 = vpop.f32.mrf.mxu0
        %v1000 = vadd.f32 0.0, %v999
        %1001 = vmatmul.bf16.gmra.mxu0 %v917
        %v1002 = vpop.f32.mrf.mxu0
        %v1003 = vadd.f32 0.0, %v1002
        %v1004 = vpop.f32.mrf.mxu0
        %v1005 = vadd.f32 0.0, %v1004
        %1006 = vmatmul.bf16.gmra.mxu0 %v920
        %v1007 = vpop.f32.mrf.mxu0
        %v1008 = vadd.f32 0.0, %v1007
        %v1009 = vpop.f32.mrf.mxu0
        %v1010 = vadd.f32 0.0, %v1009
        %1011 = vmatmul.bf16.gmra.mxu0 %v923
        %v1012 = vpop.f32.mrf.mxu0
        %v1013 = vadd.f32 0.0, %v1012
        %v1014 = vpop.f32.mrf.mxu0
        %v1015 = vadd.f32 0.0, %v1014
        %1016 = vdwg.mxu0
        %v1017 = vadd.f32 %v794, %v938
        %v1018 = vadd.f32 %v795, %v940
        %v1019 = vadd.f32 %v796, %v943
        %v1020 = vadd.f32 %v797, %v945
        %v1021 = vadd.f32 %v798, %v948
        %v1022 = vadd.f32 %v799, %v950
        %v1023 = vadd.f32 %v800, %v953
        %v1024 = vadd.f32 %v801, %v955
        %v1025 = vadd.f32 %v802, %v958
        %v1026 = vadd.f32 %v803, %v960
        %v1027 = vadd.f32 %v804, %v963
        %v1028 = vadd.f32 %v805, %v965
        %v1029 = vadd.f32 %v806, %v968
        %v1030 = vadd.f32 %v807, %v970
        %v1031 = vadd.f32 %v808, %v973
        %v1032 = vadd.f32 %v809, %v975
        %v1033 = vadd.f32 %v810, %v978
        %v1034 = vadd.f32 %v811, %v980
        %v1035 = vadd.f32 %v812, %v983
        %v1036 = vadd.f32 %v813, %v985
        %v1037 = vadd.f32 %v814, %v988
        %v1038 = vadd.f32 %v815, %v990
        %v1039 = vadd.f32 %v816, %v993
        %v1040 = vadd.f32 %v817, %v995
        %v1041 = vadd.f32 %v818, %v998
        %v1042 = vadd.f32 %v819, %v1000
        %v1043 = vadd.f32 %v820, %v1003
        %v1044 = vadd.f32 %v821, %v1005
        %v1045 = vadd.f32 %v822, %v1008
        %v1046 = vadd.f32 %v823, %v1010
        %v1047 = vadd.f32 %v824, %v1013
        %v1048 = vadd.f32 %v825, %v1015
        %v1049 = vld [vmem:[%s826 + $0x1] sm:$0xff]
        %v1050 = vld [vmem:[%s826 + $0x9] sm:$0xff]
        %v1051 = vld [vmem:[%s826 + $0x19] sm:$0xff]
        %v1052 = vld [vmem:[%s826 + $0x21] sm:$0xff]
        %v1053 = vld [vmem:[%s826 + $0x31] sm:$0xff]
        %v1054 = vld [vmem:[%s826 + $0x39] sm:$0xff]
        %v1055 = vld [vmem:[%s826 + $0x49] sm:$0xff]
        %v1056 = vld [vmem:[%s826 + $0x51] sm:$0xff]
        %v1057 = vld [vmem:[%s826 + $0x61] sm:$0xff]
        %v1058 = vld [vmem:[%s826 + $0x69] sm:$0xff]
        %v1059 = vld [vmem:[%s826 + $0x79] sm:$0xff]
        %v1060 = vld [vmem:[%s826 + $0x81] sm:$0xff]
        %v1061 = vld [vmem:[%s826 + $0x91] sm:$0xff]
        %v1062 = vld [vmem:[%s826 + $0x99] sm:$0xff]
        %v1063 = vld [vmem:[%s826 + $0xa9] sm:$0xff]
        %v1064 = vld [vmem:[%s826 + $0xb1] sm:$0xff]
        %v1065 = vld [vmem:[%s826 + $0xc1] sm:$0xff]
        %v1066 = vld [vmem:[%s826 + $0xc9] sm:$0xff]
        %v1067 = vld [vmem:[%s826 + $0xd9] sm:$0xff]
        %v1068 = vld [vmem:[%s826 + $0xe1] sm:$0xff]
        %v1069 = vld [vmem:[%s826 + $0xf1] sm:$0xff]
        %v1070 = vld [vmem:[%s826 + $0xf9] sm:$0xff]
        %v1071 = vld [vmem:[%s826 + $0x109] sm:$0xff]
        %v1072 = vld [vmem:[%s826 + $0x111] sm:$0xff]
        %v1073 = vld [vmem:[%s826 + $0x121] sm:$0xff]
        %v1074 = vld [vmem:[%s826 + $0x129] sm:$0xff]
        %v1075 = vld [vmem:[%s826 + $0x139] sm:$0xff]
        %v1076 = vld [vmem:[%s826 + $0x141] sm:$0xff]
        %v1077 = vld [vmem:[%s826 + $0x151] sm:$0xff]
        %v1078 = vld [vmem:[%s826 + $0x159] sm:$0xff]
        %v1079 = vld [vmem:[%s826 + $0x169] sm:$0xff]
        %v1080 = vld [vmem:[%s826 + $0x171] sm:$0xff]
        %v1081 = vpack.c.bf16 %v1050, %v1049
        %v1082 = vpack.c.bf16 %v1052, %v1051
        %v1083 = vpack.c.bf16 %v1054, %v1053
        %v1084 = vpack.c.bf16 %v1056, %v1055
        %v1085 = vpack.c.bf16 %v1058, %v1057
        %v1086 = vpack.c.bf16 %v1060, %v1059
        %v1087 = vpack.c.bf16 %v1062, %v1061
        %v1088 = vpack.c.bf16 %v1064, %v1063
        %v1089 = vpack.c.bf16 %v1066, %v1065
        %v1090 = vpack.c.bf16 %v1068, %v1067
        %v1091 = vpack.c.bf16 %v1070, %v1069
        %v1092 = vpack.c.bf16 %v1072, %v1071
        %v1093 = vpack.c.bf16 %v1074, %v1073
        %v1094 = vpack.c.bf16 %v1076, %v1075
        %v1095 = vpack.c.bf16 %v1078, %v1077
        %v1096 = vpack.c.bf16 %v1080, %v1079
        %s1097 = scalar_lea.vmem %s1, 8
        %v1098 = vld [vmem:[%s1097] sm:$0x3]
        %v1100 = vsel %vm322, %v1081, 0
        %v1103 = vsel %vm322, %v1082, 0
        %v1106 = vsel %vm322, %v1083, 0
        %v1109 = vsel %vm322, %v1084, 0
        %v1112 = vsel %vm322, %v1085, 0
        %v1115 = vsel %vm322, %v1086, 0
        %v1118 = vsel %vm322, %v1087, 0
        %v1121 = vsel %vm322, %v1088, 0
        %v1124 = vsel %vm322, %v1089, 0
        %v1127 = vsel %vm322, %v1090, 0
        %v1130 = vsel %vm322, %v1091, 0
        %v1133 = vsel %vm322, %v1092, 0
        %v1136 = vsel %vm322, %v1093, 0
        %v1139 = vsel %vm322, %v1094, 0
        %v1142 = vsel %vm322, %v1095, 0
        %v1145 = vsel %vm322, %v1096, 0
        %v1148 = vsel %vm371, %v1098, 0
        %1150 = vmatpush.bf16.msra.mxu0 0
        %1151 = vmatpush.bf16.msra.mxu0 0
        %1152 = vmatpush.bf16.msra.mxu0 0
        %1153 = vmatpush.bf16.msra.mxu0 0
        %1154 = vmatpush.bf16.msra.mxu0 0
        %1155 = vmatpush.bf16.msra.mxu0 0
        %1156 = vmatpush.bf16.msra.mxu0 0
        %1157 = vmatpush.bf16.msra.mxu0 %v1148
        %1158 = vmatmul.bf16.gmra.mxu0 %v1100
        %v1159 = vpop.f32.mrf.mxu0
        %v1160 = vadd.f32 0.0, %v1159
        %v1161 = vpop.f32.mrf.mxu0
        %v1162 = vadd.f32 0.0, %v1161
        %1163 = vmatmul.bf16.gmra.mxu0 %v1103
        %v1164 = vpop.f32.mrf.mxu0
        %v1165 = vadd.f32 0.0, %v1164
        %v1166 = vpop.f32.mrf.mxu0
        %v1167 = vadd.f32 0.0, %v1166
        %1168 = vmatmul.bf16.gmra.mxu0 %v1106
        %v1169 = vpop.f32.mrf.mxu0
        %v1170 = vadd.f32 0.0, %v1169
        %v1171 = vpop.f32.mrf.mxu0
        %v1172 = vadd.f32 0.0, %v1171
        %1173 = vmatmul.bf16.gmra.mxu0 %v1109
        %v1174 = vpop.f32.mrf.mxu0
        %v1175 = vadd.f32 0.0, %v1174
        %v1176 = vpop.f32.mrf.mxu0
        %v1177 = vadd.f32 0.0, %v1176
        %1178 = vmatmul.bf16.gmra.mxu0 %v1112
        %v1179 = vpop.f32.mrf.mxu0
        %v1180 = vadd.f32 0.0, %v1179
        %v1181 = vpop.f32.mrf.mxu0
        %v1182 = vadd.f32 0.0, %v1181
        %1183 = vmatmul.bf16.gmra.mxu0 %v1115
        %v1184 = vpop.f32.mrf.mxu0
        %v1185 = vadd.f32 0.0, %v1184
        %v1186 = vpop.f32.mrf.mxu0
        %v1187 = vadd.f32 0.0, %v1186
        %1188 = vmatmul.bf16.gmra.mxu0 %v1118
        %v1189 = vpop.f32.mrf.mxu0
        %v1190 = vadd.f32 0.0, %v1189
        %v1191 = vpop.f32.mrf.mxu0
        %v1192 = vadd.f32 0.0, %v1191
        %1193 = vmatmul.bf16.gmra.mxu0 %v1121
        %v1194 = vpop.f32.mrf.mxu0
        %v1195 = vadd.f32 0.0, %v1194
        %v1196 = vpop.f32.mrf.mxu0
        %v1197 = vadd.f32 0.0, %v1196
        %1198 = vmatmul.bf16.gmra.mxu0 %v1124
        %v1199 = vpop.f32.mrf.mxu0
        %v1200 = vadd.f32 0.0, %v1199
        %v1201 = vpop.f32.mrf.mxu0
        %v1202 = vadd.f32 0.0, %v1201
        %1203 = vmatmul.bf16.gmra.mxu0 %v1127
        %v1204 = vpop.f32.mrf.mxu0
        %v1205 = vadd.f32 0.0, %v1204
        %v1206 = vpop.f32.mrf.mxu0
        %v1207 = vadd.f32 0.0, %v1206
        %1208 = vmatmul.bf16.gmra.mxu0 %v1130
        %v1209 = vpop.f32.mrf.mxu0
        %v1210 = vadd.f32 0.0, %v1209
        %v1211 = vpop.f32.mrf.mxu0
        %v1212 = vadd.f32 0.0, %v1211
        %1213 = vmatmul.bf16.gmra.mxu0 %v1133
        %v1214 = vpop.f32.mrf.mxu0
        %v1215 = vadd.f32 0.0, %v1214
        %v1216 = vpop.f32.mrf.mxu0
        %v1217 = vadd.f32 0.0, %v1216
        %1218 = vmatmul.bf16.gmra.mxu0 %v1136
        %v1219 = vpop.f32.mrf.mxu0
        %v1220 = vadd.f32 0.0, %v1219
        %v1221 = vpop.f32.mrf.mxu0
        %v1222 = vadd.f32 0.0, %v1221
        %1223 = vmatmul.bf16.gmra.mxu0 %v1139
        %v1224 = vpop.f32.mrf.mxu0
        %v1225 = vadd.f32 0.0, %v1224
        %v1226 = vpop.f32.mrf.mxu0
        %v1227 = vadd.f32 0.0, %v1226
        %1228 = vmatmul.bf16.gmra.mxu0 %v1142
        %v1229 = vpop.f32.mrf.mxu0
        %v1230 = vadd.f32 0.0, %v1229
        %v1231 = vpop.f32.mrf.mxu0
        %v1232 = vadd.f32 0.0, %v1231
        %1233 = vmatmul.bf16.gmra.mxu0 %v1145
        %v1234 = vpop.f32.mrf.mxu0
        %v1235 = vadd.f32 0.0, %v1234
        %v1236 = vpop.f32.mrf.mxu0
        %v1237 = vadd.f32 0.0, %v1236
        %1238 = vdwg.mxu0
        %v1239 = vadd.f32 %v1017, %v1160
        %v1240 = vadd.f32 %v1018, %v1162
        %v1241 = vadd.f32 %v1019, %v1165
        %v1242 = vadd.f32 %v1020, %v1167
        %v1243 = vadd.f32 %v1021, %v1170
        %v1244 = vadd.f32 %v1022, %v1172
        %v1245 = vadd.f32 %v1023, %v1175
        %v1246 = vadd.f32 %v1024, %v1177
        %v1247 = vadd.f32 %v1025, %v1180
        %v1248 = vadd.f32 %v1026, %v1182
        %v1249 = vadd.f32 %v1027, %v1185
        %v1250 = vadd.f32 %v1028, %v1187
        %v1251 = vadd.f32 %v1029, %v1190
        %v1252 = vadd.f32 %v1030, %v1192
        %v1253 = vadd.f32 %v1031, %v1195
        %v1254 = vadd.f32 %v1032, %v1197
        %v1255 = vadd.f32 %v1033, %v1200
        %v1256 = vadd.f32 %v1034, %v1202
        %v1257 = vadd.f32 %v1035, %v1205
        %v1258 = vadd.f32 %v1036, %v1207
        %v1259 = vadd.f32 %v1037, %v1210
        %v1260 = vadd.f32 %v1038, %v1212
        %v1261 = vadd.f32 %v1039, %v1215
        %v1262 = vadd.f32 %v1040, %v1217
        %v1263 = vadd.f32 %v1041, %v1220
        %v1264 = vadd.f32 %v1042, %v1222
        %v1265 = vadd.f32 %v1043, %v1225
        %v1266 = vadd.f32 %v1044, %v1227
        %v1267 = vadd.f32 %v1045, %v1230
        %v1268 = vadd.f32 %v1046, %v1232
        %v1269 = vadd.f32 %v1047, %v1235
        %v1270 = vadd.f32 %v1048, %v1237
        %v1271 = vld [vmem:[%s826 + $0x2] sm:$0xff]
        %v1272 = vld [vmem:[%s826 + $0xa] sm:$0xff]
        %v1273 = vld [vmem:[%s826 + $0x1a] sm:$0xff]
        %v1274 = vld [vmem:[%s826 + $0x22] sm:$0xff]
        %v1275 = vld [vmem:[%s826 + $0x32] sm:$0xff]
        %v1276 = vld [vmem:[%s826 + $0x3a] sm:$0xff]
        %v1277 = vld [vmem:[%s826 + $0x4a] sm:$0xff]
        %v1278 = vld [vmem:[%s826 + $0x52] sm:$0xff]
        %v1279 = vld [vmem:[%s826 + $0x62] sm:$0xff]
        %v1280 = vld [vmem:[%s826 + $0x6a] sm:$0xff]
        %v1281 = vld [vmem:[%s826 + $0x7a] sm:$0xff]
        %v1282 = vld [vmem:[%s826 + $0x82] sm:$0xff]
        %v1283 = vld [vmem:[%s826 + $0x92] sm:$0xff]
        %v1284 = vld [vmem:[%s826 + $0x9a] sm:$0xff]
        %v1285 = vld [vmem:[%s826 + $0xaa] sm:$0xff]
        %v1286 = vld [vmem:[%s826 + $0xb2] sm:$0xff]
        %v1287 = vld [vmem:[%s826 + $0xc2] sm:$0xff]
        %v1288 = vld [vmem:[%s826 + $0xca] sm:$0xff]
        %v1289 = vld [vmem:[%s826 + $0xda] sm:$0xff]
        %v1290 = vld [vmem:[%s826 + $0xe2] sm:$0xff]
        %v1291 = vld [vmem:[%s826 + $0xf2] sm:$0xff]
        %v1292 = vld [vmem:[%s826 + $0xfa] sm:$0xff]
        %v1293 = vld [vmem:[%s826 + $0x10a] sm:$0xff]
        %v1294 = vld [vmem:[%s826 + $0x112] sm:$0xff]
        %v1295 = vld [vmem:[%s826 + $0x122] sm:$0xff]
        %v1296 = vld [vmem:[%s826 + $0x12a] sm:$0xff]
        %v1297 = vld [vmem:[%s826 + $0x13a] sm:$0xff]
        %v1298 = vld [vmem:[%s826 + $0x142] sm:$0xff]
        %v1299 = vld [vmem:[%s826 + $0x152] sm:$0xff]
        %v1300 = vld [vmem:[%s826 + $0x15a] sm:$0xff]
        %v1301 = vld [vmem:[%s826 + $0x16a] sm:$0xff]
        %v1302 = vld [vmem:[%s826 + $0x172] sm:$0xff]
        %v1303 = vpack.c.bf16 %v1272, %v1271
        %v1304 = vpack.c.bf16 %v1274, %v1273
        %v1305 = vpack.c.bf16 %v1276, %v1275
        %v1306 = vpack.c.bf16 %v1278, %v1277
        %v1307 = vpack.c.bf16 %v1280, %v1279
        %v1308 = vpack.c.bf16 %v1282, %v1281
        %v1309 = vpack.c.bf16 %v1284, %v1283
        %v1310 = vpack.c.bf16 %v1286, %v1285
        %v1311 = vpack.c.bf16 %v1288, %v1287
        %v1312 = vpack.c.bf16 %v1290, %v1289
        %v1313 = vpack.c.bf16 %v1292, %v1291
        %v1314 = vpack.c.bf16 %v1294, %v1293
        %v1315 = vpack.c.bf16 %v1296, %v1295
        %v1316 = vpack.c.bf16 %v1298, %v1297
        %v1317 = vpack.c.bf16 %v1300, %v1299
        %v1318 = vpack.c.bf16 %v1302, %v1301
        %s1319 = scalar_lea.vmem %s1, 10
        %v1320 = vld [vmem:[%s1319] sm:$0x3]
        %v1322 = vsel %vm322, %v1303, 0
        %v1325 = vsel %vm322, %v1304, 0
        %v1328 = vsel %vm322, %v1305, 0
        %v1331 = vsel %vm322, %v1306, 0
        %v1334 = vsel %vm322, %v1307, 0
        %v1337 = vsel %vm322, %v1308, 0
        %v1340 = vsel %vm322, %v1309, 0
        %v1343 = vsel %vm322, %v1310, 0
        %v1346 = vsel %vm322, %v1311, 0
        %v1349 = vsel %vm322, %v1312, 0
        %v1352 = vsel %vm322, %v1313, 0
        %v1355 = vsel %vm322, %v1314, 0
        %v1358 = vsel %vm322, %v1315, 0
        %v1361 = vsel %vm322, %v1316, 0
        %v1364 = vsel %vm322, %v1317, 0
        %v1367 = vsel %vm322, %v1318, 0
        %v1370 = vsel %vm371, %v1320, 0
        %1372 = vmatpush.bf16.msra.mxu0 0
        %1373 = vmatpush.bf16.msra.mxu0 0
        %1374 = vmatpush.bf16.msra.mxu0 0
        %1375 = vmatpush.bf16.msra.mxu0 0
        %1376 = vmatpush.bf16.msra.mxu0 0
        %1377 = vmatpush.bf16.msra.mxu0 0
        %1378 = vmatpush.bf16.msra.mxu0 0
        %1379 = vmatpush.bf16.msra.mxu0 %v1370
        %1380 = vmatmul.bf16.gmra.mxu0 %v1322
        %v1381 = vpop.f32.mrf.mxu0
        %v1382 = vadd.f32 0.0, %v1381
        %v1383 = vpop.f32.mrf.mxu0
        %v1384 = vadd.f32 0.0, %v1383
        %1385 = vmatmul.bf16.gmra.mxu0 %v1325
        %v1386 = vpop.f32.mrf.mxu0
        %v1387 = vadd.f32 0.0, %v1386
        %v1388 = vpop.f32.mrf.mxu0
        %v1389 = vadd.f32 0.0, %v1388
        %1390 = vmatmul.bf16.gmra.mxu0 %v1328
        %v1391 = vpop.f32.mrf.mxu0
        %v1392 = vadd.f32 0.0, %v1391
        %v1393 = vpop.f32.mrf.mxu0
        %v1394 = vadd.f32 0.0, %v1393
        %1395 = vmatmul.bf16.gmra.mxu0 %v1331
        %v1396 = vpop.f32.mrf.mxu0
        %v1397 = vadd.f32 0.0, %v1396
        %v1398 = vpop.f32.mrf.mxu0
        %v1399 = vadd.f32 0.0, %v1398
        %1400 = vmatmul.bf16.gmra.mxu0 %v1334
        %v1401 = vpop.f32.mrf.mxu0
        %v1402 = vadd.f32 0.0, %v1401
        %v1403 = vpop.f32.mrf.mxu0
        %v1404 = vadd.f32 0.0, %v1403
        %1405 = vmatmul.bf16.gmra.mxu0 %v1337
        %v1406 = vpop.f32.mrf.mxu0
        %v1407 = vadd.f32 0.0, %v1406
        %v1408 = vpop.f32.mrf.mxu0
        %v1409 = vadd.f32 0.0, %v1408
        %1410 = vmatmul.bf16.gmra.mxu0 %v1340
        %v1411 = vpop.f32.mrf.mxu0
        %v1412 = vadd.f32 0.0, %v1411
        %v1413 = vpop.f32.mrf.mxu0
        %v1414 = vadd.f32 0.0, %v1413
        %1415 = vmatmul.bf16.gmra.mxu0 %v1343
        %v1416 = vpop.f32.mrf.mxu0
        %v1417 = vadd.f32 0.0, %v1416
        %v1418 = vpop.f32.mrf.mxu0
        %v1419 = vadd.f32 0.0, %v1418
        %1420 = vmatmul.bf16.gmra.mxu0 %v1346
        %v1421 = vpop.f32.mrf.mxu0
        %v1422 = vadd.f32 0.0, %v1421
        %v1423 = vpop.f32.mrf.mxu0
        %v1424 = vadd.f32 0.0, %v1423
        %1425 = vmatmul.bf16.gmra.mxu0 %v1349
        %v1426 = vpop.f32.mrf.mxu0
        %v1427 = vadd.f32 0.0, %v1426
        %v1428 = vpop.f32.mrf.mxu0
        %v1429 = vadd.f32 0.0, %v1428
        %1430 = vmatmul.bf16.gmra.mxu0 %v1352
        %v1431 = vpop.f32.mrf.mxu0
        %v1432 = vadd.f32 0.0, %v1431
        %v1433 = vpop.f32.mrf.mxu0
        %v1434 = vadd.f32 0.0, %v1433
        %1435 = vmatmul.bf16.gmra.mxu0 %v1355
        %v1436 = vpop.f32.mrf.mxu0
        %v1437 = vadd.f32 0.0, %v1436
        %v1438 = vpop.f32.mrf.mxu0
        %v1439 = vadd.f32 0.0, %v1438
        %1440 = vmatmul.bf16.gmra.mxu0 %v1358
        %v1441 = vpop.f32.mrf.mxu0
        %v1442 = vadd.f32 0.0, %v1441
        %v1443 = vpop.f32.mrf.mxu0
        %v1444 = vadd.f32 0.0, %v1443
        %1445 = vmatmul.bf16.gmra.mxu0 %v1361
        %v1446 = vpop.f32.mrf.mxu0
        %v1447 = vadd.f32 0.0, %v1446
        %v1448 = vpop.f32.mrf.mxu0
        %v1449 = vadd.f32 0.0, %v1448
        %1450 = vmatmul.bf16.gmra.mxu0 %v1364
        %v1451 = vpop.f32.mrf.mxu0
        %v1452 = vadd.f32 0.0, %v1451
        %v1453 = vpop.f32.mrf.mxu0
        %v1454 = vadd.f32 0.0, %v1453
        %1455 = vmatmul.bf16.gmra.mxu0 %v1367
        %v1456 = vpop.f32.mrf.mxu0
        %v1457 = vadd.f32 0.0, %v1456
        %v1458 = vpop.f32.mrf.mxu0
        %v1459 = vadd.f32 0.0, %v1458
        %1460 = vdwg.mxu0
        %v1461 = vadd.f32 %v1239, %v1382
        %v1462 = vadd.f32 %v1240, %v1384
        %v1463 = vadd.f32 %v1241, %v1387
        %v1464 = vadd.f32 %v1242, %v1389
        %v1465 = vadd.f32 %v1243, %v1392
        %v1466 = vadd.f32 %v1244, %v1394
        %v1467 = vadd.f32 %v1245, %v1397
        %v1468 = vadd.f32 %v1246, %v1399
        %v1469 = vadd.f32 %v1247, %v1402
        %v1470 = vadd.f32 %v1248, %v1404
        %v1471 = vadd.f32 %v1249, %v1407
        %v1472 = vadd.f32 %v1250, %v1409
        %v1473 = vadd.f32 %v1251, %v1412
        %v1474 = vadd.f32 %v1252, %v1414
        %v1475 = vadd.f32 %v1253, %v1417
        %v1476 = vadd.f32 %v1254, %v1419
        %v1477 = vadd.f32 %v1255, %v1422
        %v1478 = vadd.f32 %v1256, %v1424
        %v1479 = vadd.f32 %v1257, %v1427
        %v1480 = vadd.f32 %v1258, %v1429
        %v1481 = vadd.f32 %v1259, %v1432
        %v1482 = vadd.f32 %v1260, %v1434
        %v1483 = vadd.f32 %v1261, %v1437
        %v1484 = vadd.f32 %v1262, %v1439
        %v1485 = vadd.f32 %v1263, %v1442
        %v1486 = vadd.f32 %v1264, %v1444
        %v1487 = vadd.f32 %v1265, %v1447
        %v1488 = vadd.f32 %v1266, %v1449
        %v1489 = vadd.f32 %v1267, %v1452
        %v1490 = vadd.f32 %v1268, %v1454
        %v1491 = vadd.f32 %v1269, %v1457
        %v1492 = vadd.f32 %v1270, %v1459
        %s1493 = scalar_lea.vmem %s221, 48
        %v1494 = vld [vmem:[%s1493] sm:$0xff]
        %v1495 = vld [vmem:[%s1493 + $0x8] sm:$0xff]
        %v1496 = vld [vmem:[%s1493 + $0x18] sm:$0xff]
        %v1497 = vld [vmem:[%s1493 + $0x20] sm:$0xff]
        %v1498 = vld [vmem:[%s1493 + $0x30] sm:$0xff]
        %v1499 = vld [vmem:[%s1493 + $0x38] sm:$0xff]
        %v1500 = vld [vmem:[%s1493 + $0x48] sm:$0xff]
        %v1501 = vld [vmem:[%s1493 + $0x50] sm:$0xff]
        %v1502 = vld [vmem:[%s1493 + $0x60] sm:$0xff]
        %v1503 = vld [vmem:[%s1493 + $0x68] sm:$0xff]
        %v1504 = vld [vmem:[%s1493 + $0x78] sm:$0xff]
        %v1505 = vld [vmem:[%s1493 + $0x80] sm:$0xff]
        %v1506 = vld [vmem:[%s1493 + $0x90] sm:$0xff]
        %v1507 = vld [vmem:[%s1493 + $0x98] sm:$0xff]
        %v1508 = vld [vmem:[%s1493 + $0xa8] sm:$0xff]
        %v1509 = vld [vmem:[%s1493 + $0xb0] sm:$0xff]
        %v1510 = vld [vmem:[%s1493 + $0xc0] sm:$0xff]
        %v1511 = vld [vmem:[%s1493 + $0xc8] sm:$0xff]
        %v1512 = vld [vmem:[%s1493 + $0xd8] sm:$0xff]
        %v1513 = vld [vmem:[%s1493 + $0xe0] sm:$0xff]
        %v1514 = vld [vmem:[%s1493 + $0xf0] sm:$0xff]
        %v1515 = vld [vmem:[%s1493 + $0xf8] sm:$0xff]
        %v1516 = vld [vmem:[%s1493 + $0x108] sm:$0xff]
        %v1517 = vld [vmem:[%s1493 + $0x110] sm:$0xff]
        %v1518 = vld [vmem:[%s1493 + $0x120] sm:$0xff]
        %v1519 = vld [vmem:[%s1493 + $0x128] sm:$0xff]
        %v1520 = vld [vmem:[%s1493 + $0x138] sm:$0xff]
        %v1521 = vld [vmem:[%s1493 + $0x140] sm:$0xff]
        %v1522 = vld [vmem:[%s1493 + $0x150] sm:$0xff]
        %v1523 = vld [vmem:[%s1493 + $0x158] sm:$0xff]
        %v1524 = vld [vmem:[%s1493 + $0x168] sm:$0xff]
        %v1525 = vld [vmem:[%s1493 + $0x170] sm:$0xff]
        %v1526 = vpack.c.bf16 %v1495, %v1494
        %v1527 = vpack.c.bf16 %v1497, %v1496
        %v1528 = vpack.c.bf16 %v1499, %v1498
        %v1529 = vpack.c.bf16 %v1501, %v1500
        %v1530 = vpack.c.bf16 %v1503, %v1502
        %v1531 = vpack.c.bf16 %v1505, %v1504
        %v1532 = vpack.c.bf16 %v1507, %v1506
        %v1533 = vpack.c.bf16 %v1509, %v1508
        %v1534 = vpack.c.bf16 %v1511, %v1510
        %v1535 = vpack.c.bf16 %v1513, %v1512
        %v1536 = vpack.c.bf16 %v1515, %v1514
        %v1537 = vpack.c.bf16 %v1517, %v1516
        %v1538 = vpack.c.bf16 %v1519, %v1518
        %v1539 = vpack.c.bf16 %v1521, %v1520
        %v1540 = vpack.c.bf16 %v1523, %v1522
        %v1541 = vpack.c.bf16 %v1525, %v1524
        %s1542 = scalar_lea.vmem %s1, 12
        %v1543 = vld [vmem:[%s1542] sm:$0x3]
        %v1545 = vsel %vm322, %v1526, 0
        %v1548 = vsel %vm322, %v1527, 0
        %v1551 = vsel %vm322, %v1528, 0
        %v1554 = vsel %vm322, %v1529, 0
        %v1557 = vsel %vm322, %v1530, 0
        %v1560 = vsel %vm322, %v1531, 0
        %v1563 = vsel %vm322, %v1532, 0
        %v1566 = vsel %vm322, %v1533, 0
        %v1569 = vsel %vm322, %v1534, 0
        %v1572 = vsel %vm322, %v1535, 0
        %v1575 = vsel %vm322, %v1536, 0
        %v1578 = vsel %vm322, %v1537, 0
        %v1581 = vsel %vm322, %v1538, 0
        %v1584 = vsel %vm322, %v1539, 0
        %v1587 = vsel %vm322, %v1540, 0
        %v1590 = vsel %vm322, %v1541, 0
        %v1593 = vsel %vm371, %v1543, 0
        %1595 = vmatpush.bf16.msra.mxu0 0
        %1596 = vmatpush.bf16.msra.mxu0 0
        %1597 = vmatpush.bf16.msra.mxu0 0
        %1598 = vmatpush.bf16.msra.mxu0 0
        %1599 = vmatpush.bf16.msra.mxu0 0
        %1600 = vmatpush.bf16.msra.mxu0 0
        %1601 = vmatpush.bf16.msra.mxu0 0
        %1602 = vmatpush.bf16.msra.mxu0 %v1593
        %1603 = vmatmul.bf16.gmra.mxu0 %v1545
        %v1604 = vpop.f32.mrf.mxu0
        %v1605 = vadd.f32 0.0, %v1604
        %v1606 = vpop.f32.mrf.mxu0
        %v1607 = vadd.f32 0.0, %v1606
        %1608 = vmatmul.bf16.gmra.mxu0 %v1548
        %v1609 = vpop.f32.mrf.mxu0
        %v1610 = vadd.f32 0.0, %v1609
        %v1611 = vpop.f32.mrf.mxu0
        %v1612 = vadd.f32 0.0, %v1611
        %1613 = vmatmul.bf16.gmra.mxu0 %v1551
        %v1614 = vpop.f32.mrf.mxu0
        %v1615 = vadd.f32 0.0, %v1614
        %v1616 = vpop.f32.mrf.mxu0
        %v1617 = vadd.f32 0.0, %v1616
        %1618 = vmatmul.bf16.gmra.mxu0 %v1554
        %v1619 = vpop.f32.mrf.mxu0
        %v1620 = vadd.f32 0.0, %v1619
        %v1621 = vpop.f32.mrf.mxu0
        %v1622 = vadd.f32 0.0, %v1621
        %1623 = vmatmul.bf16.gmra.mxu0 %v1557
        %v1624 = vpop.f32.mrf.mxu0
        %v1625 = vadd.f32 0.0, %v1624
        %v1626 = vpop.f32.mrf.mxu0
        %v1627 = vadd.f32 0.0, %v1626
        %1628 = vmatmul.bf16.gmra.mxu0 %v1560
        %v1629 = vpop.f32.mrf.mxu0
        %v1630 = vadd.f32 0.0, %v1629
        %v1631 = vpop.f32.mrf.mxu0
        %v1632 = vadd.f32 0.0, %v1631
        %1633 = vmatmul.bf16.gmra.mxu0 %v1563
        %v1634 = vpop.f32.mrf.mxu0
        %v1635 = vadd.f32 0.0, %v1634
        %v1636 = vpop.f32.mrf.mxu0
        %v1637 = vadd.f32 0.0, %v1636
        %1638 = vmatmul.bf16.gmra.mxu0 %v1566
        %v1639 = vpop.f32.mrf.mxu0
        %v1640 = vadd.f32 0.0, %v1639
        %v1641 = vpop.f32.mrf.mxu0
        %v1642 = vadd.f32 0.0, %v1641
        %1643 = vmatmul.bf16.gmra.mxu0 %v1569
        %v1644 = vpop.f32.mrf.mxu0
        %v1645 = vadd.f32 0.0, %v1644
        %v1646 = vpop.f32.mrf.mxu0
        %v1647 = vadd.f32 0.0, %v1646
        %1648 = vmatmul.bf16.gmra.mxu0 %v1572
        %v1649 = vpop.f32.mrf.mxu0
        %v1650 = vadd.f32 0.0, %v1649
        %v1651 = vpop.f32.mrf.mxu0
        %v1652 = vadd.f32 0.0, %v1651
        %1653 = vmatmul.bf16.gmra.mxu0 %v1575
        %v1654 = vpop.f32.mrf.mxu0
        %v1655 = vadd.f32 0.0, %v1654
        %v1656 = vpop.f32.mrf.mxu0
        %v1657 = vadd.f32 0.0, %v1656
        %1658 = vmatmul.bf16.gmra.mxu0 %v1578
        %v1659 = vpop.f32.mrf.mxu0
        %v1660 = vadd.f32 0.0, %v1659
        %v1661 = vpop.f32.mrf.mxu0
        %v1662 = vadd.f32 0.0, %v1661
        %1663 = vmatmul.bf16.gmra.mxu0 %v1581
        %v1664 = vpop.f32.mrf.mxu0
        %v1665 = vadd.f32 0.0, %v1664
        %v1666 = vpop.f32.mrf.mxu0
        %v1667 = vadd.f32 0.0, %v1666
        %1668 = vmatmul.bf16.gmra.mxu0 %v1584
        %v1669 = vpop.f32.mrf.mxu0
        %v1670 = vadd.f32 0.0, %v1669
        %v1671 = vpop.f32.mrf.mxu0
        %v1672 = vadd.f32 0.0, %v1671
        %1673 = vmatmul.bf16.gmra.mxu0 %v1587
        %v1674 = vpop.f32.mrf.mxu0
        %v1675 = vadd.f32 0.0, %v1674
        %v1676 = vpop.f32.mrf.mxu0
        %v1677 = vadd.f32 0.0, %v1676
        %1678 = vmatmul.bf16.gmra.mxu0 %v1590
        %v1679 = vpop.f32.mrf.mxu0
        %v1680 = vadd.f32 0.0, %v1679
        %v1681 = vpop.f32.mrf.mxu0
        %v1682 = vadd.f32 0.0, %v1681
        %1683 = vdwg.mxu0
        %v1684 = vadd.f32 %v1461, %v1605
        %v1685 = vadd.f32 %v1462, %v1607
        %v1686 = vadd.f32 %v1463, %v1610
        %v1687 = vadd.f32 %v1464, %v1612
        %v1688 = vadd.f32 %v1465, %v1615
        %v1689 = vadd.f32 %v1466, %v1617
        %v1690 = vadd.f32 %v1467, %v1620
        %v1691 = vadd.f32 %v1468, %v1622
        %v1692 = vadd.f32 %v1469, %v1625
        %v1693 = vadd.f32 %v1470, %v1627
        %v1694 = vadd.f32 %v1471, %v1630
        %v1695 = vadd.f32 %v1472, %v1632
        %v1696 = vadd.f32 %v1473, %v1635
        %v1697 = vadd.f32 %v1474, %v1637
        %v1698 = vadd.f32 %v1475, %v1640
        %v1699 = vadd.f32 %v1476, %v1642
        %v1700 = vadd.f32 %v1477, %v1645
        %v1701 = vadd.f32 %v1478, %v1647
        %v1702 = vadd.f32 %v1479, %v1650
        %v1703 = vadd.f32 %v1480, %v1652
        %v1704 = vadd.f32 %v1481, %v1655
        %v1705 = vadd.f32 %v1482, %v1657
        %v1706 = vadd.f32 %v1483, %v1660
        %v1707 = vadd.f32 %v1484, %v1662
        %v1708 = vadd.f32 %v1485, %v1665
        %v1709 = vadd.f32 %v1486, %v1667
        %v1710 = vadd.f32 %v1487, %v1670
        %v1711 = vadd.f32 %v1488, %v1672
        %v1712 = vadd.f32 %v1489, %v1675
        %v1713 = vadd.f32 %v1490, %v1677
        %v1714 = vadd.f32 %v1491, %v1680
        %v1715 = vadd.f32 %v1492, %v1682
        %v1716 = vld [vmem:[%s1493 + $0x1] sm:$0xff]
        %v1717 = vld [vmem:[%s1493 + $0x9] sm:$0xff]
        %v1718 = vld [vmem:[%s1493 + $0x19] sm:$0xff]
        %v1719 = vld [vmem:[%s1493 + $0x21] sm:$0xff]
        %v1720 = vld [vmem:[%s1493 + $0x31] sm:$0xff]
        %v1721 = vld [vmem:[%s1493 + $0x39] sm:$0xff]
        %v1722 = vld [vmem:[%s1493 + $0x49] sm:$0xff]
        %v1723 = vld [vmem:[%s1493 + $0x51] sm:$0xff]
        %v1724 = vld [vmem:[%s1493 + $0x61] sm:$0xff]
        %v1725 = vld [vmem:[%s1493 + $0x69] sm:$0xff]
        %v1726 = vld [vmem:[%s1493 + $0x79] sm:$0xff]
        %v1727 = vld [vmem:[%s1493 + $0x81] sm:$0xff]
        %v1728 = vld [vmem:[%s1493 + $0x91] sm:$0xff]
        %v1729 = vld [vmem:[%s1493 + $0x99] sm:$0xff]
        %v1730 = vld [vmem:[%s1493 + $0xa9] sm:$0xff]
        %v1731 = vld [vmem:[%s1493 + $0xb1] sm:$0xff]
        %v1732 = vld [vmem:[%s1493 + $0xc1] sm:$0xff]
        %v1733 = vld [vmem:[%s1493 + $0xc9] sm:$0xff]
        %v1734 = vld [vmem:[%s1493 + $0xd9] sm:$0xff]
        %v1735 = vld [vmem:[%s1493 + $0xe1] sm:$0xff]
        %v1736 = vld [vmem:[%s1493 + $0xf1] sm:$0xff]
        %v1737 = vld [vmem:[%s1493 + $0xf9] sm:$0xff]
        %v1738 = vld [vmem:[%s1493 + $0x109] sm:$0xff]
        %v1739 = vld [vmem:[%s1493 + $0x111] sm:$0xff]
        %v1740 = vld [vmem:[%s1493 + $0x121] sm:$0xff]
        %v1741 = vld [vmem:[%s1493 + $0x129] sm:$0xff]
        %v1742 = vld [vmem:[%s1493 + $0x139] sm:$0xff]
        %v1743 = vld [vmem:[%s1493 + $0x141] sm:$0xff]
        %v1744 = vld [vmem:[%s1493 + $0x151] sm:$0xff]
        %v1745 = vld [vmem:[%s1493 + $0x159] sm:$0xff]
        %v1746 = vld [vmem:[%s1493 + $0x169] sm:$0xff]
        %v1747 = vld [vmem:[%s1493 + $0x171] sm:$0xff]
        %v1748 = vpack.c.bf16 %v1717, %v1716
        %v1749 = vpack.c.bf16 %v1719, %v1718
        %v1750 = vpack.c.bf16 %v1721, %v1720
        %v1751 = vpack.c.bf16 %v1723, %v1722
        %v1752 = vpack.c.bf16 %v1725, %v1724
        %v1753 = vpack.c.bf16 %v1727, %v1726
        %v1754 = vpack.c.bf16 %v1729, %v1728
        %v1755 = vpack.c.bf16 %v1731, %v1730
        %v1756 = vpack.c.bf16 %v1733, %v1732
        %v1757 = vpack.c.bf16 %v1735, %v1734
        %v1758 = vpack.c.bf16 %v1737, %v1736
        %v1759 = vpack.c.bf16 %v1739, %v1738
        %v1760 = vpack.c.bf16 %v1741, %v1740
        %v1761 = vpack.c.bf16 %v1743, %v1742
        %v1762 = vpack.c.bf16 %v1745, %v1744
        %v1763 = vpack.c.bf16 %v1747, %v1746
        %s1764 = scalar_lea.vmem %s1, 14
        %v1765 = vld [vmem:[%s1764] sm:$0x3]
        %v1767 = vsel %vm322, %v1748, 0
        %v1770 = vsel %vm322, %v1749, 0
        %v1773 = vsel %vm322, %v1750, 0
        %v1776 = vsel %vm322, %v1751, 0
        %v1779 = vsel %vm322, %v1752, 0
        %v1782 = vsel %vm322, %v1753, 0
        %v1785 = vsel %vm322, %v1754, 0
        %v1788 = vsel %vm322, %v1755, 0
        %v1791 = vsel %vm322, %v1756, 0
        %v1794 = vsel %vm322, %v1757, 0
        %v1797 = vsel %vm322, %v1758, 0
        %v1800 = vsel %vm322, %v1759, 0
        %v1803 = vsel %vm322, %v1760, 0
        %v1806 = vsel %vm322, %v1761, 0
        %v1809 = vsel %vm322, %v1762, 0
        %v1812 = vsel %vm322, %v1763, 0
        %v1815 = vsel %vm371, %v1765, 0
        %1817 = vmatpush.bf16.msra.mxu0 0
        %1818 = vmatpush.bf16.msra.mxu0 0
        %1819 = vmatpush.bf16.msra.mxu0 0
        %1820 = vmatpush.bf16.msra.mxu0 0
        %1821 = vmatpush.bf16.msra.mxu0 0
        %1822 = vmatpush.bf16.msra.mxu0 0
        %1823 = vmatpush.bf16.msra.mxu0 0
        %1824 = vmatpush.bf16.msra.mxu0 %v1815
        %1825 = vmatmul.bf16.gmra.mxu0 %v1767
        %v1826 = vpop.f32.mrf.mxu0
        %v1827 = vadd.f32 0.0, %v1826
        %v1828 = vpop.f32.mrf.mxu0
        %v1829 = vadd.f32 0.0, %v1828
        %1830 = vmatmul.bf16.gmra.mxu0 %v1770
        %v1831 = vpop.f32.mrf.mxu0
        %v1832 = vadd.f32 0.0, %v1831
        %v1833 = vpop.f32.mrf.mxu0
        %v1834 = vadd.f32 0.0, %v1833
        %1835 = vmatmul.bf16.gmra.mxu0 %v1773
        %v1836 = vpop.f32.mrf.mxu0
        %v1837 = vadd.f32 0.0, %v1836
        %v1838 = vpop.f32.mrf.mxu0
        %v1839 = vadd.f32 0.0, %v1838
        %1840 = vmatmul.bf16.gmra.mxu0 %v1776
        %v1841 = vpop.f32.mrf.mxu0
        %v1842 = vadd.f32 0.0, %v1841
        %v1843 = vpop.f32.mrf.mxu0
        %v1844 = vadd.f32 0.0, %v1843
        %1845 = vmatmul.bf16.gmra.mxu0 %v1779
        %v1846 = vpop.f32.mrf.mxu0
        %v1847 = vadd.f32 0.0, %v1846
        %v1848 = vpop.f32.mrf.mxu0
        %v1849 = vadd.f32 0.0, %v1848
        %1850 = vmatmul.bf16.gmra.mxu0 %v1782
        %v1851 = vpop.f32.mrf.mxu0
        %v1852 = vadd.f32 0.0, %v1851
        %v1853 = vpop.f32.mrf.mxu0
        %v1854 = vadd.f32 0.0, %v1853
        %1855 = vmatmul.bf16.gmra.mxu0 %v1785
        %v1856 = vpop.f32.mrf.mxu0
        %v1857 = vadd.f32 0.0, %v1856
        %v1858 = vpop.f32.mrf.mxu0
        %v1859 = vadd.f32 0.0, %v1858
        %1860 = vmatmul.bf16.gmra.mxu0 %v1788
        %v1861 = vpop.f32.mrf.mxu0
        %v1862 = vadd.f32 0.0, %v1861
        %v1863 = vpop.f32.mrf.mxu0
        %v1864 = vadd.f32 0.0, %v1863
        %1865 = vmatmul.bf16.gmra.mxu0 %v1791
        %v1866 = vpop.f32.mrf.mxu0
        %v1867 = vadd.f32 0.0, %v1866
        %v1868 = vpop.f32.mrf.mxu0
        %v1869 = vadd.f32 0.0, %v1868
        %1870 = vmatmul.bf16.gmra.mxu0 %v1794
        %v1871 = vpop.f32.mrf.mxu0
        %v1872 = vadd.f32 0.0, %v1871
        %v1873 = vpop.f32.mrf.mxu0
        %v1874 = vadd.f32 0.0, %v1873
        %1875 = vmatmul.bf16.gmra.mxu0 %v1797
        %v1876 = vpop.f32.mrf.mxu0
        %v1877 = vadd.f32 0.0, %v1876
        %v1878 = vpop.f32.mrf.mxu0
        %v1879 = vadd.f32 0.0, %v1878
        %1880 = vmatmul.bf16.gmra.mxu0 %v1800
        %v1881 = vpop.f32.mrf.mxu0
        %v1882 = vadd.f32 0.0, %v1881
        %v1883 = vpop.f32.mrf.mxu0
        %v1884 = vadd.f32 0.0, %v1883
        %1885 = vmatmul.bf16.gmra.mxu0 %v1803
        %v1886 = vpop.f32.mrf.mxu0
        %v1887 = vadd.f32 0.0, %v1886
        %v1888 = vpop.f32.mrf.mxu0
        %v1889 = vadd.f32 0.0, %v1888
        %1890 = vmatmul.bf16.gmra.mxu0 %v1806
        %v1891 = vpop.f32.mrf.mxu0
        %v1892 = vadd.f32 0.0, %v1891
        %v1893 = vpop.f32.mrf.mxu0
        %v1894 = vadd.f32 0.0, %v1893
        %1895 = vmatmul.bf16.gmra.mxu0 %v1809
        %v1896 = vpop.f32.mrf.mxu0
        %v1897 = vadd.f32 0.0, %v1896
        %v1898 = vpop.f32.mrf.mxu0
        %v1899 = vadd.f32 0.0, %v1898
        %1900 = vmatmul.bf16.gmra.mxu0 %v1812
        %v1901 = vpop.f32.mrf.mxu0
        %v1902 = vadd.f32 0.0, %v1901
        %v1903 = vpop.f32.mrf.mxu0
        %v1904 = vadd.f32 0.0, %v1903
        %1905 = vdwg.mxu0
        %v1906 = vadd.f32 %v1684, %v1827
        %v1907 = vadd.f32 %v1685, %v1829
        %v1908 = vadd.f32 %v1686, %v1832
        %v1909 = vadd.f32 %v1687, %v1834
        %v1910 = vadd.f32 %v1688, %v1837
        %v1911 = vadd.f32 %v1689, %v1839
        %v1912 = vadd.f32 %v1690, %v1842
        %v1913 = vadd.f32 %v1691, %v1844
        %v1914 = vadd.f32 %v1692, %v1847
        %v1915 = vadd.f32 %v1693, %v1849
        %v1916 = vadd.f32 %v1694, %v1852
        %v1917 = vadd.f32 %v1695, %v1854
        %v1918 = vadd.f32 %v1696, %v1857
        %v1919 = vadd.f32 %v1697, %v1859
        %v1920 = vadd.f32 %v1698, %v1862
        %v1921 = vadd.f32 %v1699, %v1864
        %v1922 = vadd.f32 %v1700, %v1867
        %v1923 = vadd.f32 %v1701, %v1869
        %v1924 = vadd.f32 %v1702, %v1872
        %v1925 = vadd.f32 %v1703, %v1874
        %v1926 = vadd.f32 %v1704, %v1877
        %v1927 = vadd.f32 %v1705, %v1879
        %v1928 = vadd.f32 %v1706, %v1882
        %v1929 = vadd.f32 %v1707, %v1884
        %v1930 = vadd.f32 %v1708, %v1887
        %v1931 = vadd.f32 %v1709, %v1889
        %v1932 = vadd.f32 %v1710, %v1892
        %v1933 = vadd.f32 %v1711, %v1894
        %v1934 = vadd.f32 %v1712, %v1897
        %v1935 = vadd.f32 %v1713, %v1899
        %v1936 = vadd.f32 %v1714, %v1902
        %v1937 = vadd.f32 %v1715, %v1904
        %v1938 = vld [vmem:[%s1493 + $0x2] sm:$0xff]
        %v1939 = vld [vmem:[%s1493 + $0xa] sm:$0xff]
        %v1940 = vld [vmem:[%s1493 + $0x1a] sm:$0xff]
        %v1941 = vld [vmem:[%s1493 + $0x22] sm:$0xff]
        %v1942 = vld [vmem:[%s1493 + $0x32] sm:$0xff]
        %v1943 = vld [vmem:[%s1493 + $0x3a] sm:$0xff]
        %v1944 = vld [vmem:[%s1493 + $0x4a] sm:$0xff]
        %v1945 = vld [vmem:[%s1493 + $0x52] sm:$0xff]
        %v1946 = vld [vmem:[%s1493 + $0x62] sm:$0xff]
        %v1947 = vld [vmem:[%s1493 + $0x6a] sm:$0xff]
        %v1948 = vld [vmem:[%s1493 + $0x7a] sm:$0xff]
        %v1949 = vld [vmem:[%s1493 + $0x82] sm:$0xff]
        %v1950 = vld [vmem:[%s1493 + $0x92] sm:$0xff]
        %v1951 = vld [vmem:[%s1493 + $0x9a] sm:$0xff]
        %v1952 = vld [vmem:[%s1493 + $0xaa] sm:$0xff]
        %v1953 = vld [vmem:[%s1493 + $0xb2] sm:$0xff]
        %v1954 = vld [vmem:[%s1493 + $0xc2] sm:$0xff]
        %v1955 = vld [vmem:[%s1493 + $0xca] sm:$0xff]
        %v1956 = vld [vmem:[%s1493 + $0xda] sm:$0xff]
        %v1957 = vld [vmem:[%s1493 + $0xe2] sm:$0xff]
        %v1958 = vld [vmem:[%s1493 + $0xf2] sm:$0xff]
        %v1959 = vld [vmem:[%s1493 + $0xfa] sm:$0xff]
        %v1960 = vld [vmem:[%s1493 + $0x10a] sm:$0xff]
        %v1961 = vld [vmem:[%s1493 + $0x112] sm:$0xff]
        %v1962 = vld [vmem:[%s1493 + $0x122] sm:$0xff]
        %v1963 = vld [vmem:[%s1493 + $0x12a] sm:$0xff]
        %v1964 = vld [vmem:[%s1493 + $0x13a] sm:$0xff]
        %v1965 = vld [vmem:[%s1493 + $0x142] sm:$0xff]
        %v1966 = vld [vmem:[%s1493 + $0x152] sm:$0xff]
        %v1967 = vld [vmem:[%s1493 + $0x15a] sm:$0xff]
        %v1968 = vld [vmem:[%s1493 + $0x16a] sm:$0xff]
        %v1969 = vld [vmem:[%s1493 + $0x172] sm:$0xff]
        %v1970 = vpack.c.bf16 %v1939, %v1938
        %v1971 = vpack.c.bf16 %v1941, %v1940
        %v1972 = vpack.c.bf16 %v1943, %v1942
        %v1973 = vpack.c.bf16 %v1945, %v1944
        %v1974 = vpack.c.bf16 %v1947, %v1946
        %v1975 = vpack.c.bf16 %v1949, %v1948
        %v1976 = vpack.c.bf16 %v1951, %v1950
        %v1977 = vpack.c.bf16 %v1953, %v1952
        %v1978 = vpack.c.bf16 %v1955, %v1954
        %v1979 = vpack.c.bf16 %v1957, %v1956
        %v1980 = vpack.c.bf16 %v1959, %v1958
        %v1981 = vpack.c.bf16 %v1961, %v1960
        %v1982 = vpack.c.bf16 %v1963, %v1962
        %v1983 = vpack.c.bf16 %v1965, %v1964
        %v1984 = vpack.c.bf16 %v1967, %v1966
        %v1985 = vpack.c.bf16 %v1969, %v1968
        %s1986 = scalar_lea.vmem %s1, 16
        %v1987 = vld [vmem:[%s1986] sm:$0x3]
        %v1989 = vsel %vm322, %v1970, 0
        %v1992 = vsel %vm322, %v1971, 0
        %v1995 = vsel %vm322, %v1972, 0
        %v1998 = vsel %vm322, %v1973, 0
        %v2001 = vsel %vm322, %v1974, 0
        %v2004 = vsel %vm322, %v1975, 0
        %v2007 = vsel %vm322, %v1976, 0
        %v2010 = vsel %vm322, %v1977, 0
        %v2013 = vsel %vm322, %v1978, 0
        %v2016 = vsel %vm322, %v1979, 0
        %v2019 = vsel %vm322, %v1980, 0
        %v2022 = vsel %vm322, %v1981, 0
        %v2025 = vsel %vm322, %v1982, 0
        %v2028 = vsel %vm322, %v1983, 0
        %v2031 = vsel %vm322, %v1984, 0
        %v2034 = vsel %vm322, %v1985, 0
        %v2037 = vsel %vm371, %v1987, 0
        %2039 = vmatpush.bf16.msra.mxu0 0
        %2040 = vmatpush.bf16.msra.mxu0 0
        %2041 = vmatpush.bf16.msra.mxu0 0
        %2042 = vmatpush.bf16.msra.mxu0 0
        %2043 = vmatpush.bf16.msra.mxu0 0
        %2044 = vmatpush.bf16.msra.mxu0 0
        %2045 = vmatpush.bf16.msra.mxu0 0
        %2046 = vmatpush.bf16.msra.mxu0 %v2037
        %2047 = vmatmul.bf16.gmra.mxu0 %v1989
        %v2048 = vpop.f32.mrf.mxu0
        %v2049 = vadd.f32 0.0, %v2048
        %v2050 = vpop.f32.mrf.mxu0
        %v2051 = vadd.f32 0.0, %v2050
        %2052 = vmatmul.bf16.gmra.mxu0 %v1992
        %v2053 = vpop.f32.mrf.mxu0
        %v2054 = vadd.f32 0.0, %v2053
        %v2055 = vpop.f32.mrf.mxu0
        %v2056 = vadd.f32 0.0, %v2055
        %2057 = vmatmul.bf16.gmra.mxu0 %v1995
        %v2058 = vpop.f32.mrf.mxu0
        %v2059 = vadd.f32 0.0, %v2058
        %v2060 = vpop.f32.mrf.mxu0
        %v2061 = vadd.f32 0.0, %v2060
        %2062 = vmatmul.bf16.gmra.mxu0 %v1998
        %v2063 = vpop.f32.mrf.mxu0
        %v2064 = vadd.f32 0.0, %v2063
        %v2065 = vpop.f32.mrf.mxu0
        %v2066 = vadd.f32 0.0, %v2065
        %2067 = vmatmul.bf16.gmra.mxu0 %v2001
        %v2068 = vpop.f32.mrf.mxu0
        %v2069 = vadd.f32 0.0, %v2068
        %v2070 = vpop.f32.mrf.mxu0
        %v2071 = vadd.f32 0.0, %v2070
        %2072 = vmatmul.bf16.gmra.mxu0 %v2004
        %v2073 = vpop.f32.mrf.mxu0
        %v2074 = vadd.f32 0.0, %v2073
        %v2075 = vpop.f32.mrf.mxu0
        %v2076 = vadd.f32 0.0, %v2075
        %2077 = vmatmul.bf16.gmra.mxu0 %v2007
        %v2078 = vpop.f32.mrf.mxu0
        %v2079 = vadd.f32 0.0, %v2078
        %v2080 = vpop.f32.mrf.mxu0
        %v2081 = vadd.f32 0.0, %v2080
        %2082 = vmatmul.bf16.gmra.mxu0 %v2010
        %v2083 = vpop.f32.mrf.mxu0
        %v2084 = vadd.f32 0.0, %v2083
        %v2085 = vpop.f32.mrf.mxu0
        %v2086 = vadd.f32 0.0, %v2085
        %2087 = vmatmul.bf16.gmra.mxu0 %v2013
        %v2088 = vpop.f32.mrf.mxu0
        %v2089 = vadd.f32 0.0, %v2088
        %v2090 = vpop.f32.mrf.mxu0
        %v2091 = vadd.f32 0.0, %v2090
        %2092 = vmatmul.bf16.gmra.mxu0 %v2016
        %v2093 = vpop.f32.mrf.mxu0
        %v2094 = vadd.f32 0.0, %v2093
        %v2095 = vpop.f32.mrf.mxu0
        %v2096 = vadd.f32 0.0, %v2095
        %2097 = vmatmul.bf16.gmra.mxu0 %v2019
        %v2098 = vpop.f32.mrf.mxu0
        %v2099 = vadd.f32 0.0, %v2098
        %v2100 = vpop.f32.mrf.mxu0
        %v2101 = vadd.f32 0.0, %v2100
        %2102 = vmatmul.bf16.gmra.mxu0 %v2022
        %v2103 = vpop.f32.mrf.mxu0
        %v2104 = vadd.f32 0.0, %v2103
        %v2105 = vpop.f32.mrf.mxu0
        %v2106 = vadd.f32 0.0, %v2105
        %2107 = vmatmul.bf16.gmra.mxu0 %v2025
        %v2108 = vpop.f32.mrf.mxu0
        %v2109 = vadd.f32 0.0, %v2108
        %v2110 = vpop.f32.mrf.mxu0
        %v2111 = vadd.f32 0.0, %v2110
        %2112 = vmatmul.bf16.gmra.mxu0 %v2028
        %v2113 = vpop.f32.mrf.mxu0
        %v2114 = vadd.f32 0.0, %v2113
        %v2115 = vpop.f32.mrf.mxu0
        %v2116 = vadd.f32 0.0, %v2115
        %2117 = vmatmul.bf16.gmra.mxu0 %v2031
        %v2118 = vpop.f32.mrf.mxu0
        %v2119 = vadd.f32 0.0, %v2118
        %v2120 = vpop.f32.mrf.mxu0
        %v2121 = vadd.f32 0.0, %v2120
        %2122 = vmatmul.bf16.gmra.mxu0 %v2034
        %v2123 = vpop.f32.mrf.mxu0
        %v2124 = vadd.f32 0.0, %v2123
        %v2125 = vpop.f32.mrf.mxu0
        %v2126 = vadd.f32 0.0, %v2125
        %2127 = vdwg.mxu0
        %v2128 = vadd.f32 %v1906, %v2049
        %v2129 = vadd.f32 %v1907, %v2051
        %v2130 = vadd.f32 %v1908, %v2054
        %v2131 = vadd.f32 %v1909, %v2056
        %v2132 = vadd.f32 %v1910, %v2059
        %v2133 = vadd.f32 %v1911, %v2061
        %v2134 = vadd.f32 %v1912, %v2064
        %v2135 = vadd.f32 %v1913, %v2066
        %v2136 = vadd.f32 %v1914, %v2069
        %v2137 = vadd.f32 %v1915, %v2071
        %v2138 = vadd.f32 %v1916, %v2074
        %v2139 = vadd.f32 %v1917, %v2076
        %v2140 = vadd.f32 %v1918, %v2079
        %v2141 = vadd.f32 %v1919, %v2081
        %v2142 = vadd.f32 %v1920, %v2084
        %v2143 = vadd.f32 %v1921, %v2086
        %v2144 = vadd.f32 %v1922, %v2089
        %v2145 = vadd.f32 %v1923, %v2091
        %v2146 = vadd.f32 %v1924, %v2094
        %v2147 = vadd.f32 %v1925, %v2096
        %v2148 = vadd.f32 %v1926, %v2099
        %v2149 = vadd.f32 %v1927, %v2101
        %v2150 = vadd.f32 %v1928, %v2104
        %v2151 = vadd.f32 %v1929, %v2106
        %v2152 = vadd.f32 %v1930, %v2109
        %v2153 = vadd.f32 %v1931, %v2111
        %v2154 = vadd.f32 %v1932, %v2114
        %v2155 = vadd.f32 %v1933, %v2116
        %v2156 = vadd.f32 %v1934, %v2119
        %v2157 = vadd.f32 %v1935, %v2121
        %v2158 = vadd.f32 %v1936, %v2124
        %v2159 = vadd.f32 %v1937, %v2126
        %v2160 = vld [vmem:[%s2] sm:$0x1]
        %v2162 = vperm.slane %v2160, 0
        %v2164 = vadd.f32 %v2128, %v2162
        %v2165 = vadd.f32 %v2129, %v2162
        %v2166 = vadd.f32 %v2130, %v2162
        %v2167 = vadd.f32 %v2131, %v2162
        %v2168 = vadd.f32 %v2132, %v2162
        %v2169 = vadd.f32 %v2133, %v2162
        %v2170 = vadd.f32 %v2134, %v2162
        %v2171 = vadd.f32 %v2135, %v2162
        %v2172 = vadd.f32 %v2136, %v2162
        %v2173 = vadd.f32 %v2137, %v2162
        %v2174 = vadd.f32 %v2138, %v2162
        %v2175 = vadd.f32 %v2139, %v2162
        %v2176 = vadd.f32 %v2140, %v2162
        %v2177 = vadd.f32 %v2141, %v2162
        %v2178 = vadd.f32 %v2142, %v2162
        %v2179 = vadd.f32 %v2143, %v2162
        %v2180 = vadd.f32 %v2144, %v2162
        %v2181 = vadd.f32 %v2145, %v2162
        %v2182 = vadd.f32 %v2146, %v2162
        %v2183 = vadd.f32 %v2147, %v2162
        %v2184 = vadd.f32 %v2148, %v2162
        %v2185 = vadd.f32 %v2149, %v2162
        %v2186 = vadd.f32 %v2150, %v2162
        %v2187 = vadd.f32 %v2151, %v2162
        %v2188 = vadd.f32 %v2152, %v2162
        %v2189 = vadd.f32 %v2153, %v2162
        %v2190 = vadd.f32 %v2154, %v2162
        %v2191 = vadd.f32 %v2155, %v2162
        %v2192 = vadd.f32 %v2156, %v2162
        %v2193 = vadd.f32 %v2157, %v2162
        %v2194 = vadd.f32 %v2158, %v2162
        %v2195 = vadd.f32 %v2159, %v2162
        %v2196 = vmax.f32 %v2164, 0.0
        %v2197 = vmax.f32 %v2165, 0.0
        %v2198 = vmax.f32 %v2166, 0.0
        %v2199 = vmax.f32 %v2167, 0.0
        %v2200 = vmax.f32 %v2168, 0.0
        %v2201 = vmax.f32 %v2169, 0.0
        %v2202 = vmax.f32 %v2170, 0.0
        %v2203 = vmax.f32 %v2171, 0.0
        %v2204 = vmax.f32 %v2172, 0.0
        %v2205 = vmax.f32 %v2173, 0.0
        %v2206 = vmax.f32 %v2174, 0.0
        %v2207 = vmax.f32 %v2175, 0.0
        %v2208 = vmax.f32 %v2176, 0.0
        %v2209 = vmax.f32 %v2177, 0.0
        %v2210 = vmax.f32 %v2178, 0.0
        %v2211 = vmax.f32 %v2179, 0.0
        %v2212 = vmax.f32 %v2180, 0.0
        %v2213 = vmax.f32 %v2181, 0.0
        %v2214 = vmax.f32 %v2182, 0.0
        %v2215 = vmax.f32 %v2183, 0.0
        %v2216 = vmax.f32 %v2184, 0.0
        %v2217 = vmax.f32 %v2185, 0.0
        %v2218 = vmax.f32 %v2186, 0.0
        %v2219 = vmax.f32 %v2187, 0.0
        %v2220 = vmax.f32 %v2188, 0.0
        %v2221 = vmax.f32 %v2189, 0.0
        %v2222 = vmax.f32 %v2190, 0.0
        %v2223 = vmax.f32 %v2191, 0.0
        %v2224 = vmax.f32 %v2192, 0.0
        %v2225 = vmax.f32 %v2193, 0.0
        %v2226 = vmax.f32 %v2194, 0.0
        %v2227 = vmax.f32 %v2195, 0.0
        %v2228 = vadd.f32 %v2196, %v2197
        %v2229 = vadd.f32 %v2228, %v2198
        %v2230 = vadd.f32 %v2229, %v2199
        %v2231 = vadd.f32 %v2230, %v2200
        %v2232 = vadd.f32 %v2231, %v2201
        %v2233 = vadd.f32 %v2232, %v2202
        %v2234 = vadd.f32 %v2233, %v2203
        %v2235 = vadd.f32 %v2234, %v2204
        %v2236 = vadd.f32 %v2235, %v2205
        %v2237 = vadd.f32 %v2236, %v2206
        %v2238 = vadd.f32 %v2237, %v2207
        %v2239 = vadd.f32 %v2238, %v2208
        %v2240 = vadd.f32 %v2239, %v2209
        %v2241 = vadd.f32 %v2240, %v2210
        %v2242 = vadd.f32 %v2241, %v2211
        %v2243 = vadd.f32 %v2242, %v2212
        %v2244 = vadd.f32 %v2243, %v2213
        %v2245 = vadd.f32 %v2244, %v2214
        %v2246 = vadd.f32 %v2245, %v2215
        %v2247 = vadd.f32 %v2246, %v2216
        %v2248 = vadd.f32 %v2247, %v2217
        %v2249 = vadd.f32 %v2248, %v2218
        %v2250 = vadd.f32 %v2249, %v2219
        %v2251 = vadd.f32 %v2250, %v2220
        %v2252 = vadd.f32 %v2251, %v2221
        %v2253 = vadd.f32 %v2252, %v2222
        %v2254 = vadd.f32 %v2253, %v2223
        %v2255 = vadd.f32 %v2254, %v2224
        %v2256 = vadd.f32 %v2255, %v2225
        %v2257 = vadd.f32 %v2256, %v2226
        %v2258 = vadd.f32 %v2257, %v2227
        %v2259 = vrot.slane %v2258, 4
        %v2260 = vadd.f32 %v2258, %v2259
        %v2261 = vrot.slane %v2260, 2
        %v2262 = vadd.f32 %v2260, %v2261
        %v2263 = vrot.slane %v2262, 1
        %v2264 = vadd.f32 %v2262, %v2263
        %v2265 = vrcp.pop 256.0
        %v2266 = vmul.f32 256.0, %v2265
        %v2267 = vsub.f32 1.0, %v2266
        %v2268 = vmul.f32 %v2265, %v2267
        %v2269 = vadd.f32 %v2265, %v2268
        %vm2270 = vweird.f32 %v2265
        %v2271 = vsel %vm2270, %v2265, %v2269
        %v2272 = vmul.f32 %v2264, %v2271
        %v2273 = vpack.c.bf16 %v2272, %v2272
        %v2274 = vld [vmem:[%s3] sm:$0xf]
        %v2275 = vld [vmem:[%s3 + $0x4] sm:$0xf]
        %v2276 = vld [vmem:[%s3 + $0x8] sm:$0xf]
        %v2277 = vld [vmem:[%s3 + $0xc] sm:$0xf]
        %v2278 = vld [vmem:[%s3 + $0x10] sm:$0xf]
        %v2279 = vld [vmem:[%s3 + $0x14] sm:$0xf]
        %v2280 = vld [vmem:[%s3 + $0x18] sm:$0xf]
        %v2281 = vld [vmem:[%s3 + $0x1c] sm:$0xf]
        %v2282 = vld [vmem:[%s3 + $0x20] sm:$0xf]
        %v2283 = vld [vmem:[%s3 + $0x24] sm:$0xf]
        %v2284 = vld [vmem:[%s3 + $0x28] sm:$0xf]
        %v2285 = vld [vmem:[%s3 + $0x2c] sm:$0xf]
        %v2286 = vld [vmem:[%s3 + $0x30] sm:$0xf]
        %v2287 = vld [vmem:[%s3 + $0x34] sm:$0xf]
        %v2288 = vld [vmem:[%s3 + $0x38] sm:$0xf]
        %v2289 = vld [vmem:[%s3 + $0x3c] sm:$0xf]
        %v2290 = vld [vmem:[%s4] sm:$0x1]
        %v2307 = vunpack.c.l.b16 %v2274
        %v2308 = vunpack.c.l.b16 %v2275
        %v2309 = vunpack.c.l.b16 %v2276
        %v2310 = vunpack.c.l.b16 %v2277
        %v2311 = vunpack.c.l.b16 %v2278
        %v2312 = vunpack.c.l.b16 %v2279
        %v2313 = vunpack.c.l.b16 %v2280
        %v2314 = vunpack.c.l.b16 %v2281
        %v2315 = vunpack.c.l.b16 %v2282
        %v2316 = vunpack.c.l.b16 %v2283
        %v2317 = vunpack.c.l.b16 %v2284
        %v2318 = vunpack.c.l.b16 %v2285
        %v2319 = vunpack.c.l.b16 %v2286
        %v2320 = vunpack.c.l.b16 %v2287
        %v2321 = vunpack.c.l.b16 %v2288
        %v2322 = vunpack.c.l.b16 %v2289
        %v2323 = vpack.c.b16 %v2308, %v2307
        %v2324 = vpack.c.b16 %v2310, %v2309
        %v2325 = vpack.c.b16 %v2312, %v2311
        %v2326 = vpack.c.b16 %v2314, %v2313
        %v2327 = vpack.c.b16 %v2316, %v2315
        %v2328 = vpack.c.b16 %v2318, %v2317
        %v2329 = vpack.c.b16 %v2320, %v2319
        %v2330 = vpack.c.b16 %v2322, %v2321
        %2339 = vmatpush.bf16.msra.mxu0 %v2330
        %2340 = vmatpush.bf16.msra.mxu0 %v2329
        %2341 = vmatpush.bf16.msra.mxu0 %v2328
        %2342 = vmatpush.bf16.msra.mxu0 %v2327
        %2343 = vmatpush.bf16.msra.mxu0 %v2326
        %2344 = vmatpush.bf16.msra.mxu0 %v2325
        %2345 = vmatpush.bf16.msra.mxu0 %v2324
        %2346 = vmatpush.bf16.msra.mxu0 %v2323
        %2347 = vmatmul.bf16.gmra.mxu0 %v2273
        %v2348 = vpop.f32.mrf.mxu0
        %v2349 = vadd.f32 %v2290, %v2348
        %v2350 = vpop.f32.mrf.mxu0
        %2351 = vdwg.mxu0
        %2352 = vst [vmem:[%s216] sm:$0x1] %v2349
        %s2353 = sand.u32 %s137, 1
        %s2354 = scalar_lea.sflag [#allocation3], %s2353
        %s2355 = sand.u32 %s137, 1
        %s2356 = scalar_lea.vmem [#allocation2], %s2355
        // Predicated region
        $region41: #{tpu_custom_call.1} parent=39 // pred_check
          %p2357 = pneg %p147
        $region42: #{tpu_custom_call.1} parent=39 // pred_check_branch
          %2359 = sbr.rel (%p2357) target = $region44
        $region43: #{tpu_custom_call.1} parent=39 // pred_region
          %2361 = vsyncadd %s2354, 0
          %s2362 = scalar_lea.hbm %s5, %s19
          %s2364 = sshll.u32 %s2356, 4
          %s2365 = int_to_ptr.vmem [resolvable:$true] %s2364
          %s2366 = sshll.u32 %s2362, 4
          %s2367 = int_to_ptr.hbm [resolvable:$true] %s2366
          %2369 = dma.vmem_to_hbm [thread:$0]  %s2365, 16, %s2367, %s2354
        $region44: #{tpu_custom_call.1} parent=39 // pred_fallthru
          _
      $region40: #{tpu_custom_call.1} parent=5 // pred_fallthru
        _
      %p2370 = scmp.le.s32.totalorder 2, %s14
      // Predicated region
      $region45: #{tpu_custom_call.1} parent=5 // pred_check
        %p2371 = pneg %p2370
      $region46: #{tpu_custom_call.1} parent=5 // pred_check_branch
        %2373 = sbr.rel (%p2371) target = $region48
      $region47: #{tpu_custom_call.1} parent=5 // pred_region
        %s2374 = ssub.s32 %s14, 2
        // Predicated region
        $region49: #{tpu_custom_call.1} parent=47 // pred_check
          %p2375 = pneg %p153
        $region50: #{tpu_custom_call.1} parent=47 // pred_check_branch
          %2377 = sbr.rel (%p2375) target = $region52
        $region51: #{tpu_custom_call.1} parent=47 // pred_region
          %s2378 = sand.u32 %s138, 1
          %s2379 = scalar_lea.sflag [#allocation3], %s2378
          %s2380 = sand.u32 %s138, 1
          %s2381 = scalar_lea.vmem [#allocation2], %s2380
          %2383 = dma.done %s2379, 16
        $region52: #{tpu_custom_call.1} parent=47 // pred_fallthru
          _
      $region48: #{tpu_custom_call.1} parent=5 // pred_fallthru
        _
    $region6: #{tpu_custom_call.1} parent=1 // loop_footer
      %s18 = sadd.s32 1, %s14
    $region7: #{tpu_custom_call.1} parent=1 // loop_footer_branch
      %13 = sbr.rel target = $region3
    $region8: #{tpu_custom_call.1} parent=1 // loop_exit
      _
    %2384 = vsyncpa [#allocation3], 1
    %s2385 = scalar_lea.sflag [#allocation3], 1
    %2386 = vsyncpa %s2385, 1

</llo_original>
